<compile_context>
chip_gen: v7x
topology: tpu7x:2x2x1
jax: 0.10.0
libtpu: 0.0.40
codegen_flags: <defaults>
</compile_context>

<pallas_src>
import functools

import jax
import jax.numpy as jnp
import numpy as np
from jax.experimental import pallas as pl
from jax.experimental.pallas import tpu as pltpu


def _round_up(x, m):
    return ((x + m - 1) // m) * m


def _padded_vmem_bytes(shape, dtype):
    """VMEM footprint of a 2-D buffer after (8, 128) tile padding."""
    sub = _round_up(shape[0], 8)
    lane = _round_up(shape[1], 128)
    return sub * lane * np.dtype(dtype).itemsize


# ---------------------------------------------------------------------------
# Kernel: batch on the LANE axis throughout, ensemble folded into the sublane
# axis of one fused weight matrix.  The F (contraction) axis may be tiled
# (grid axis 1, "arbitrary") and accumulated in an f32 VMEM scratch.
# ---------------------------------------------------------------------------
def _ensemble_kernel(xT_ref, w1T_ref, b1T_ref, w2T_ref, b2T_ref, out_ref,
                     h_acc, *, inv_n, inv_nm1):
    kf = pl.program_id(1)

    @pl.when(kf == 0)
    def _init():
        h_acc[...] = jnp.zeros_like(h_acc)

    # Fused first layer over ALL ensemble members: one MXU matmul per F-tile,
    # f32 accumulation regardless of (bf16) input dtype.
    h_acc[...] += jnp.dot(w1T_ref[...], xT_ref[...],
                          preferred_element_type=jnp.float32)   # [MH, tb]

    @pl.when(kf == pl.num_programs(1) - 1)
    def _finalize():
        h = jnp.maximum(h_acc[...] + b1T_ref[...], 0.0)          # [MH, tb] f32
        # Block-diagonal second layer -> per-model energies, batch on lanes.
        e = jnp.dot(w2T_ref[...], h.astype(w2T_ref.dtype),
                    preferred_element_type=jnp.float32) + b2T_ref[...]  # [M, tb]
        # torch.stack(...).mean/std(dim=0): moments over the (sublane) model axis.
        mean = jnp.sum(e, axis=0, keepdims=True) * inv_n          # [1, tb]
        d = e - mean
        var = jnp.sum(d * d, axis=0, keepdims=True) * inv_nm1     # unbiased
        std = jnp.sqrt(jnp.maximum(var, 0.0))
        out_ref[...] = jnp.concatenate([mean, std], axis=0)       # [2, tb] lane-dense


def fold_ensemble_params(W1, b1, W2, b2, *, use_bf16=True, lane_multiple=256):
    """One-time repack of per-model weights into the fused, padded, transposed
    layout the kernel consumes (hoisted out of the per-call path).

    W1: [M, F, H]  b1: [M, 1, H]  W2: [M, H, 1]  b2: [M, 1, 1]
    """
    M, F, H = W1.shape
    MH = M * H
    MH_pad = _round_up(MH, lane_multiple)   # aligned K for the 2nd matmul
    F_pad = _round_up(F, 128)               # aligned K for the 1st matmul
    in_dtype = jnp.bfloat16 if use_bf16 else jnp.float32

    # W1_T[m*H + h, f] = W1[m, f, h]; zero-padded rows/cols contribute nothing.
    W1_T = jnp.transpose(W1, (0, 2, 1)).reshape(MH, F)
    W1_T = jnp.pad(W1_T, ((0, MH_pad - MH), (0, F_pad - F))).astype(in_dtype)
    b1_T = jnp.pad(b1.reshape(MH, 1).astype(jnp.float32),
                   ((0, MH_pad - MH), (0, 0)))
    # Block-diagonal W2^T: row m holds W2[m, :, 0] in columns [m*H, (m+1)*H).
    col_model = jnp.arange(MH) // H
    w2_flat = W2[:, :, 0].reshape(MH)
    W2_T = jnp.where(col_model[None, :] == jnp.arange(M)[:, None],
                     w2_flat[None, :], 0.0)
    W2_T = jnp.pad(W2_T, ((0, 0), (0, MH_pad - MH))).astype(in_dtype)
    b2_T = b2.reshape(M, 1).astype(jnp.float32)

    return dict(W1_T=W1_T, b1_T=b1_T, W2_T=W2_T, b2_T=b2_T,
                M=M, F=F, H=H, MH_pad=MH_pad, F_pad=F_pad)


def ensemble_energy_pallas(feats, folded, *, block_b=512, block_f=None):
    """feats: [B, F] float; folded: output of fold_ensemble_params.
    Returns (mean [B], unbiased std [B]) of the ensemble energies."""
    W1_T, b1_T, W2_T, b2_T = (folded["W1_T"], folded["b1_T"],
                              folded["W2_T"], folded["b2_T"])
    M, F = folded["M"], folded["F"]
    MH_pad, F_pad = folded["MH_pad"], folded["F_pad"]
    in_dtype = W1_T.dtype
    itemsize = np.dtype(in_dtype).itemsize
    B = feats.shape[0]
    assert feats.shape[1] == F

    # ---- batch-on-lanes input: transpose + zero-pad F and B to tile multiples.
    block_b = max(128, _round_up(block_b, 128))
    tb = min(block_b, _round_up(B, 128))
    B_pad = _round_up(B, tb)
    x_T = jnp.pad(feats.astype(jnp.float32).T,
                  ((0, F_pad - F), (0, B_pad - B))).astype(in_dtype)
    n_b = B_pad // tb

    # ---- F (contraction) tiling: keep the per-step W1 tile small enough that
    # the resident working set fits v7x's 64 MiB/TC (also fine on v5e/v6e).
    if block_f is None:
        budget = 12 << 20
        block_f = F_pad
        if MH_pad * F_pad * itemsize > budget:
            for cand in (4096, 2048, 1024, 512, 256, 128):
                if F_pad % cand == 0 and MH_pad * cand * itemsize * 2 <= budget:
                    block_f = cand
                    break
            else:
                block_f = 128
    assert F_pad % block_f == 0, "block_f must divide padded F"
    n_f = F_pad // block_f

    inv_n = 1.0 / float(M)
    inv_nm1 = 1.0 / float(M - 1) if M > 1 else float("nan")  # torch.std(1 sample)=nan
    kernel = functools.partial(_ensemble_kernel, inv_n=inv_n, inv_nm1=inv_nm1)

    # ---- explicit scoped-VMEM budget (worst case: double-buffered weights).
    working = (
        2 * _padded_vmem_bytes((block_f, tb), in_dtype)         # x tile
        + 2 * _padded_vmem_bytes((MH_pad, block_f), in_dtype)   # W1 tile
        + _padded_vmem_bytes((MH_pad, 1), jnp.float32)          # b1
        + _padded_vmem_bytes((M, MH_pad), in_dtype)             # block-diag W2
        + _padded_vmem_bytes((M, 1), jnp.float32)               # b2
        + 2 * _padded_vmem_bytes((2, tb), jnp.float32)          # fused output
        + _padded_vmem_bytes((MH_pad, tb), jnp.float32))        # h accumulator
    vmem_limit = int(min(64 << 20, max(working + (8 << 20), 32 << 20)))

    out_shape = jax.ShapeDtypeStruct((2, B_pad), jnp.float32)
    compiler_params = pltpu.CompilerParams(
        dimension_semantics=("parallel", "arbitrary"),   # batch | F-reduction
        vmem_limit_bytes=vmem_limit)

    def _run(single_buffer_weights):
        # Constant-index weight/bias specs gain nothing from double-buffering;
        # single-buffer them to halve their resident VMEM footprint.
        const = ({"pipeline_mode": pl.Buffered(1)}
                 if single_buffer_weights else {})
        w1_mode = const if n_f == 1 else {}
        grid_spec = pltpu.PrefetchScalarGridSpec(
            num_scalar_prefetch=0,
            grid=(n_b, n_f),
            in_specs=[
                pl.BlockSpec((block_f, tb), lambda i, k: (k, i)),          # x_T
                pl.BlockSpec((MH_pad, block_f), lambda i, k: (0, k), **w1_mode),
                pl.BlockSpec((MH_pad, 1), lambda i, k: (0, 0), **const),   # b1_T
                pl.BlockSpec((M, MH_pad), lambda i, k: (0, 0), **const),   # W2_T
                pl.BlockSpec((M, 1), lambda i, k: (0, 0), **const),        # b2_T
            ],
            out_specs=pl.BlockSpec((2, tb), lambda i, k: (0, i)),          # fused
            scratch_shapes=[pltpu.VMEM((MH_pad, tb), jnp.float32)],
        )
        return pl.pallas_call(
            kernel, out_shape=out_shape, grid_spec=grid_spec,
            compiler_params=compiler_params,
        )(x_T, W1_T, b1_T, W2_T, b2_T)

    try:
        out = _run(True)
    except Exception:
        # Fallback for jax versions without BlockSpec(pipeline_mode=Buffered(1)).
        out = _run(False)

    return out[0, :B], out[1, :B]


def build_features(data):
    """Select x=['coord','numbers','charge'] and flatten into [B, 3N + N + 1]."""
    coord = data["coord"].astype(jnp.float32)              # [B, N, 3]
    numbers = data["numbers"].astype(jnp.float32)          # [B, N]
    charge = data["charge"].astype(jnp.float32)            # [B]
    B = coord.shape[0]
    return jnp.concatenate([coord.reshape(B, -1), numbers, charge[:, None]],
                           axis=1)


def ensembled_model_forward(data, folded_params, out_key="energy"):
    """Mirrors EnsembledModel.forward (x=['coord','numbers','charge'],
    out=['energy']): runs all ensemble members, adds '<out>' (mean over models)
    and '<out>_std' (unbiased std over models) to the data dict."""
    feats = build_features(data)
    mean, std = ensemble_energy_pallas(feats, folded_params)
    out = dict(data)
    out[out_key] = mean
    out[out_key + "_std"] = std
    # TODO(synk): `detach=True` is a no-op here (inference path, no autograd graph).
    return out


def _reference(feats, W1, b1, W2, b2):
    h = jnp.maximum(jnp.einsum("bf,mfh->mbh", feats, W1) + b1, 0.0)
    e = (jnp.einsum("mbh,mho->mbo", h, W2) + b2)[..., 0]    # [M, B]
    return e.mean(axis=0), e.std(axis=0, ddof=1)


if __name__ == "__main__":
    def make_problem(key, M, B, N, H):
        F = 3 * N + N + 1  # flattened coords + atomic numbers + total charge
        ks = jax.random.split(key, 7)
        data = {
            "coord": jax.random.normal(ks[0], (B, N, 3), dtype=jnp.float32),
            "numbers": jax.random.randint(ks[1], (B, N), 1, 10).astype(jnp.float32),
            "charge": jax.random.randint(ks[2], (B,), -1, 2).astype(jnp.float32),
        }
        W1 = 0.1 * jax.random.normal(ks[3], (M, F, H), dtype=jnp.float32)
        b1 = 0.1 * jax.random.normal(ks[4], (M, 1, H), dtype=jnp.float32)
        W2 = 0.1 * jax.random.normal(ks[5], (M, H, 1), dtype=jnp.float32)
        b2 = 0.1 * jax.random.normal(ks[6], (M, 1, 1), dtype=jnp.float32)
        return data, (W1, b1, W2, b2)

    k1, k2 = jax.random.split(jax.random.PRNGKey(0))

    # ---- main demo: 5 ensemble members, 8 molecules, 4 atoms each ------------
    data, (W1, b1, W2, b2) = make_problem(k1, M=5, B=8, N=4, H=32)
    feats = build_features(data)
    ref_mean, ref_std = _reference(feats, W1, b1, W2, b2)

    # Exact f32 path (tight check of the fused/padded/transposed kernel).
    folded_f32 = fold_ensemble_params(W1, b1, W2, b2, use_bf16=False)
    mean32, std32 = ensemble_energy_pallas(feats, folded_f32)
    jax.block_until_ready((mean32, std32))
    np.testing.assert_allclose(np.asarray(mean32), np.asarray(ref_mean),
                               rtol=1e-4, atol=1e-5)
    np.testing.assert_allclose(np.asarray(std32), np.asarray(ref_std),
                               rtol=1e-4, atol=1e-5)

    # Default (bf16 MXU inputs, f32 accumulation) full-module forward.
    folded = fold_ensemble_params(W1, b1, W2, b2)          # use_bf16=True default
    out = ensembled_model_forward(data, folded)
    jax.block_until_ready(out["energy"])
    jax.block_until_ready(out["energy_std"])
    np.testing.assert_allclose(np.asarray(out["energy"]), np.asarray(ref_mean),
                               rtol=5e-2, atol=3e-2)
    np.testing.assert_allclose(np.asarray(out["energy_std"]), np.asarray(ref_std),
                               rtol=5e-2, atol=3e-2)

    # ---- larger-F problem exercising the F-reduction (accumulator) path ------
    data2, (W1b, b1b, W2b, b2b) = make_problem(k2, M=3, B=8, N=80, H=32)
    feats2 = build_features(data2)
    ref_mean2, ref_std2 = _reference(feats2, W1b, b1b, W2b, b2b)
    folded2 = fold_ensemble_params(W1b, b1b, W2b, b2b, use_bf16=False)
    mean2, std2 = ensemble_energy_pallas(feats2, folded2, block_f=128)  # 3 F-tiles
    jax.block_until_ready((mean2, std2))
    np.testing.assert_allclose(np.asarray(mean2), np.asarray(ref_mean2),
                               rtol=1e-4, atol=1e-5)
    np.testing.assert_allclose(np.asarray(std2), np.asarray(ref_std2),
                               rtol=1e-4, atol=1e-5)

    print("KERNEL_OK")
</pallas_src>

<mosaic_0001>
module attributes {stable_mosaic.version = 11 : i64} {
  func.func @_ensemble_kernel(%arg0: i32, %arg1: i32, %arg2: memref<128x128xf32, #tpu.memory_space<vmem>>, %arg3: memref<256x128xf32, #tpu.memory_space<vmem>>, %arg4: memref<256x1xf32, #tpu.memory_space<vmem>>, %arg5: memref<5x256xf32, #tpu.memory_space<vmem>>, %arg6: memref<5x1xf32, #tpu.memory_space<vmem>>, %arg7: memref<2x128xf32, #tpu.memory_space<vmem>>, %arg8: memref<256x128xf32, #tpu.memory_space<vmem>>) attributes {dimension_semantics = [#tpu.dimension_semantics<parallel>, #tpu.dimension_semantics<arbitrary>], iteration_bounds = array<i64: 1, 1>, scalar_prefetch = 0 : i64, scratch_operands = 1 : i64, tpu.core_type = #tpu.core_type<tc>, window_params = [{transform_indices = @transform_0, window_bounds = array<i64: 128, 128>}, {pipeline_mode = #tpu.pipeline_mode<synchronous>, transform_indices = @transform_1, window_bounds = array<i64: 256, 128>}, {pipeline_mode = #tpu.pipeline_mode<synchronous>, transform_indices = @transform_2, window_bounds = array<i64: 256, 1>}, {pipeline_mode = #tpu.pipeline_mode<synchronous>, transform_indices = @transform_3, window_bounds = array<i64: 5, 256>}, {pipeline_mode = #tpu.pipeline_mode<synchronous>, transform_indices = @transform_4, window_bounds = array<i64: 5, 1>}, {transform_indices = @transform_5, window_bounds = array<i64: 2, 128>}]} {
    %c0_i32 = arith.constant 0 : i32
    %0 = arith.cmpi eq, %arg1, %c0_i32 : i32
    %1 = arith.extui %0 : i1 to i32
    %c0_i32_0 = arith.constant 0 : i32
    %2 = arith.cmpi ne, %1, %c0_i32_0 : i32
    scf.if %2 {
      %cst_10 = arith.constant 0.000000e+00 : f32
      %12 = vector.broadcast %cst_10 : f32 to vector<256x128xf32>
      %c0_11 = arith.constant 0 : index
      %c0_12 = arith.constant 0 : index
      %13 = vector.load %arg8[%c0_11, %c0_12] : memref<256x128xf32, #tpu.memory_space<vmem>>, vector<256x128xf32>
      tpu.vector_store %arg8[%c0_11, %c0_12], %12 {strides = array<i32>} : memref<256x128xf32, #tpu.memory_space<vmem>>, vector<256x128xf32>,
    } else {
    }
    %c0 = arith.constant 0 : index
    %c0_1 = arith.constant 0 : index
    %3 = vector.load %arg8[%c0, %c0_1] : memref<256x128xf32, #tpu.memory_space<vmem>>, vector<256x128xf32>
    %c0_2 = arith.constant 0 : index
    %c0_3 = arith.constant 0 : index
    %4 = vector.load %arg3[%c0_2, %c0_3] : memref<256x128xf32, #tpu.memory_space<vmem>>, vector<256x128xf32>
    %c0_4 = arith.constant 0 : index
    %c0_5 = arith.constant 0 : index
    %5 = vector.load %arg2[%c0_4, %c0_5] : memref<128x128xf32, #tpu.memory_space<vmem>>, vector<128x128xf32>
    %cst = arith.constant dense<0.000000e+00> : vector<256x128xf32>
    %6 = tpu.matmul %4, %5, %cst {dimension_numbers = #tpu.dot_dimension_numbers<[1], [0], [0], [1], [0, 0, 1, 1], [], []>} : vector<256x128xf32>, vector<128x128xf32>, vector<256x128xf32> -> vector<256x128xf32>
    %7 = arith.addf %3, %6 : vector<256x128xf32>
    %c0_6 = arith.constant 0 : index
    %c0_7 = arith.constant 0 : index
    %8 = vector.load %arg8[%c0_6, %c0_7] : memref<256x128xf32, #tpu.memory_space<vmem>>, vector<256x128xf32>
    tpu.vector_store %arg8[%c0_6, %c0_7], %7 {strides = array<i32>} : memref<256x128xf32, #tpu.memory_space<vmem>>, vector<256x128xf32>,
    %c0_i32_8 = arith.constant 0 : i32
    %9 = arith.cmpi eq, %arg1, %c0_i32_8 : i32
    %10 = arith.extui %9 : i1 to i32
    %c0_i32_9 = arith.constant 0 : i32
    %11 = arith.cmpi ne, %10, %c0_i32_9 : i32
    scf.if %11 {
      %c0_10 = arith.constant 0 : index
      %c0_11 = arith.constant 0 : index
      %12 = vector.load %arg8[%c0_10, %c0_11] : memref<256x128xf32, #tpu.memory_space<vmem>>, vector<256x128xf32>
      %c0_12 = arith.constant 0 : index
      %c0_13 = arith.constant 0 : index
      %13 = vector.load %arg4[%c0_12, %c0_13] : memref<256x1xf32, #tpu.memory_space<vmem>>, vector<256x1xf32>
      %14 = vector.broadcast %13 : vector<256x1xf32> to vector<256x128xf32>
      %15 = arith.addf %12, %14 : vector<256x128xf32>
      %cst_14 = arith.constant 0.000000e+00 : f32
      %16 = vector.broadcast %cst_14 : f32 to vector<256x128xf32>
      %17 = arith.maximumf %15, %16 : vector<256x128xf32>
      %c0_15 = arith.constant 0 : index
      %c0_16 = arith.constant 0 : index
      %18 = vector.load %arg5[%c0_15, %c0_16] : memref<5x256xf32, #tpu.memory_space<vmem>>, vector<5x256xf32>
      %cst_17 = arith.constant dense<0.000000e+00> : vector<5x128xf32>
      %19 = tpu.matmul %18, %17, %cst_17 {dimension_numbers = #tpu.dot_dimension_numbers<[1], [0], [0], [1], [0, 0, 1, 1], [], []>} : vector<5x256xf32>, vector<256x128xf32>, vector<5x128xf32> -> vector<5x128xf32>
      %c0_18 = arith.constant 0 : index
      %c0_19 = arith.constant 0 : index
      %20 = vector.load %arg6[%c0_18, %c0_19] : memref<5x1xf32, #tpu.memory_space<vmem>>, vector<5x1xf32>
      %21 = vector.broadcast %20 : vector<5x1xf32> to vector<5x128xf32>
      %22 = arith.addf %19, %21 : vector<5x128xf32>
      %cst_20 = arith.constant dense<0.000000e+00> : vector<128xf32>
      %23 = vector.multi_reduction <add>, %22, %cst_20 [0] : vector<5x128xf32> to vector<128xf32>
      %24 = vector.shape_cast %23 : vector<128xf32> to vector<1x128xf32>
      %cst_21 = arith.constant 2.000000e-01 : f32
      %25 = vector.broadcast %cst_21 : f32 to vector<1x128xf32>
      %26 = arith.mulf %24, %25 : vector<1x128xf32>
      %27 = vector.broadcast %26 : vector<1x128xf32> to vector<5x128xf32>
      %28 = arith.subf %22, %27 : vector<5x128xf32>
      %29 = arith.mulf %28, %28 : vector<5x128xf32>
      %cst_22 = arith.constant dense<0.000000e+00> : vector<128xf32>
      %30 = vector.multi_reduction <add>, %29, %cst_22 [0] : vector<5x128xf32> to vector<128xf32>
      %31 = vector.shape_cast %30 : vector<128xf32> to vector<1x128xf32>
      %cst_23 = arith.constant 2.500000e-01 : f32
      %32 = vector.broadcast %cst_23 : f32 to vector<1x128xf32>
      %33 = arith.mulf %31, %32 : vector<1x128xf32>
      %cst_24 = arith.constant 0.000000e+00 : f32
      %34 = vector.broadcast %cst_24 : f32 to vector<1x128xf32>
      %35 = arith.maximumf %33, %34 : vector<1x128xf32>
      %36 = math.sqrt %35 : vector<1x128xf32>
      %37 = tpu.concatenate %26, %36 in 0 : vector<1x128xf32>, vector<1x128xf32> -> vector<2x128xf32>
      %c0_25 = arith.constant 0 : index
      %c0_26 = arith.constant 0 : index
      %38 = vector.load %arg7[%c0_25, %c0_26] : memref<2x128xf32, #tpu.memory_space<vmem>>, vector<2x128xf32>
      tpu.vector_store %arg7[%c0_25, %c0_26], %37 {strides = array<i32>} : memref<2x128xf32, #tpu.memory_space<vmem>>, vector<2x128xf32>,
    } else {
    }
    return
  }
  func.func @transform_0(%arg0: i32, %arg1: i32) -> (i32, i32) {
    %c0_i32 = arith.constant 0 : i32
    return %arg1, %arg0 : i32, i32
  }
  func.func @transform_1(%arg0: i32, %arg1: i32) -> (i32, i32) {
    %c0_i32 = arith.constant 0 : i32
    %c0_i32_0 = arith.constant 0 : i32
    return %c0_i32, %arg1 : i32, i32
  }
  func.func @transform_2(%arg0: i32, %arg1: i32) -> (i32, i32) {
    %c0_i32 = arith.constant 0 : i32
    %c0_i32_0 = arith.constant 0 : i32
    %c0_i32_1 = arith.constant 0 : i32
    return %c0_i32, %c0_i32_0 : i32, i32
  }
  func.func @transform_3(%arg0: i32, %arg1: i32) -> (i32, i32) {
    %c0_i32 = arith.constant 0 : i32
    %c0_i32_0 = arith.constant 0 : i32
    %c0_i32_1 = arith.constant 0 : i32
    return %c0_i32, %c0_i32_0 : i32, i32
  }
  func.func @transform_4(%arg0: i32, %arg1: i32) -> (i32, i32) {
    %c0_i32 = arith.constant 0 : i32
    %c0_i32_0 = arith.constant 0 : i32
    %c0_i32_1 = arith.constant 0 : i32
    return %c0_i32, %c0_i32_0 : i32, i32
  }
  func.func @transform_5(%arg0: i32, %arg1: i32) -> (i32, i32) {
    %c0_i32 = arith.constant 0 : i32
    %c0_i32_0 = arith.constant 0 : i32
    return %c0_i32, %arg0 : i32, i32
  }
}

module attributes {stable_mosaic.version = 11 : i64} {
  func.func @_ensemble_kernel(%arg0: i32, %arg1: i32, %arg2: memref<128x128xf32, #tpu.memory_space<vmem>>, %arg3: memref<256x128xf32, #tpu.memory_space<vmem>>, %arg4: memref<256x1xf32, #tpu.memory_space<vmem>>, %arg5: memref<5x256xf32, #tpu.memory_space<vmem>>, %arg6: memref<5x1xf32, #tpu.memory_space<vmem>>, %arg7: memref<2x128xf32, #tpu.memory_space<vmem>>, %arg8: memref<256x128xf32, #tpu.memory_space<vmem>>) attributes {dimension_semantics = [#tpu.dimension_semantics<parallel>, #tpu.dimension_semantics<arbitrary>], iteration_bounds = array<i64: 1, 1>, scalar_prefetch = 0 : i64, scratch_operands = 1 : i64, tpu.core_type = #tpu.core_type<tc>, window_params = [{transform_indices = @transform_0, window_bounds = array<i64: 128, 128>}, {transform_indices = @transform_1, window_bounds = array<i64: 256, 128>}, {pipeline_mode = #tpu.pipeline_mode<synchronous>, transform_indices = @transform_2, window_bounds = array<i64: 256, 1>}, {pipeline_mode = #tpu.pipeline_mode<synchronous>, transform_indices = @transform_3, window_bounds = array<i64: 5, 256>}, {pipeline_mode = #tpu.pipeline_mode<synchronous>, transform_indices = @transform_4, window_bounds = array<i64: 5, 1>}, {transform_indices = @transform_5, window_bounds = array<i64: 2, 128>}]} {
    %c0_i32 = arith.constant 0 : i32
    %0 = arith.cmpi eq, %arg1, %c0_i32 : i32
    %1 = arith.extui %0 : i1 to i32
    %c0_i32_0 = arith.constant 0 : i32
    %2 = arith.cmpi ne, %1, %c0_i32_0 : i32
    scf.if %2 {
      %cst_10 = arith.constant 0.000000e+00 : f32
      %12 = vector.broadcast %cst_10 : f32 to vector<256x128xf32>
      %c0_11 = arith.constant 0 : index
      %c0_12 = arith.constant 0 : index
      %13 = vector.load %arg8[%c0_11, %c0_12] : memref<256x128xf32, #tpu.memory_space<vmem>>, vector<256x128xf32>
      tpu.vector_store %arg8[%c0_11, %c0_12], %12 {strides = array<i32>} : memref<256x128xf32, #tpu.memory_space<vmem>>, vector<256x128xf32>,
    } else {
    }
    %c0 = arith.constant 0 : index
    %c0_1 = arith.constant 0 : index
    %3 = vector.load %arg8[%c0, %c0_1] : memref<256x128xf32, #tpu.memory_space<vmem>>, vector<256x128xf32>
    %c0_2 = arith.constant 0 : index
    %c0_3 = arith.constant 0 : index
    %4 = vector.load %arg3[%c0_2, %c0_3] : memref<256x128xf32, #tpu.memory_space<vmem>>, vector<256x128xf32>
    %c0_4 = arith.constant 0 : index
    %c0_5 = arith.constant 0 : index
    %5 = vector.load %arg2[%c0_4, %c0_5] : memref<128x128xf32, #tpu.memory_space<vmem>>, vector<128x128xf32>
    %cst = arith.constant dense<0.000000e+00> : vector<256x128xf32>
    %6 = tpu.matmul %4, %5, %cst {dimension_numbers = #tpu.dot_dimension_numbers<[1], [0], [0], [1], [0, 0, 1, 1], [], []>} : vector<256x128xf32>, vector<128x128xf32>, vector<256x128xf32> -> vector<256x128xf32>
    %7 = arith.addf %3, %6 : vector<256x128xf32>
    %c0_6 = arith.constant 0 : index
    %c0_7 = arith.constant 0 : index
    %8 = vector.load %arg8[%c0_6, %c0_7] : memref<256x128xf32, #tpu.memory_space<vmem>>, vector<256x128xf32>
    tpu.vector_store %arg8[%c0_6, %c0_7], %7 {strides = array<i32>} : memref<256x128xf32, #tpu.memory_space<vmem>>, vector<256x128xf32>,
    %c0_i32_8 = arith.constant 0 : i32
    %9 = arith.cmpi eq, %arg1, %c0_i32_8 : i32
    %10 = arith.extui %9 : i1 to i32
    %c0_i32_9 = arith.constant 0 : i32
    %11 = arith.cmpi ne, %10, %c0_i32_9 : i32
    scf.if %11 {
      %c0_10 = arith.constant 0 : index
      %c0_11 = arith.constant 0 : index
      %12 = vector.load %arg8[%c0_10, %c0_11] : memref<256x128xf32, #tpu.memory_space<vmem>>, vector<256x128xf32>
      %c0_12 = arith.constant 0 : index
      %c0_13 = arith.constant 0 : index
      %13 = vector.load %arg4[%c0_12, %c0_13] : memref<256x1xf32, #tpu.memory_space<vmem>>, vector<256x1xf32>
      %14 = vector.broadcast %13 : vector<256x1xf32> to vector<256x128xf32>
      %15 = arith.addf %12, %14 : vector<256x128xf32>
      %cst_14 = arith.constant 0.000000e+00 : f32
      %16 = vector.broadcast %cst_14 : f32 to vector<256x128xf32>
      %17 = arith.maximumf %15, %16 : vector<256x128xf32>
      %c0_15 = arith.constant 0 : index
      %c0_16 = arith.constant 0 : index
      %18 = vector.load %arg5[%c0_15, %c0_16] : memref<5x256xf32, #tpu.memory_space<vmem>>, vector<5x256xf32>
      %cst_17 = arith.constant dense<0.000000e+00> : vector<5x128xf32>
      %19 = tpu.matmul %18, %17, %cst_17 {dimension_numbers = #tpu.dot_dimension_numbers<[1], [0], [0], [1], [0, 0, 1, 1], [], []>} : vector<5x256xf32>, vector<256x128xf32>, vector<5x128xf32> -> vector<5x128xf32>
      %c0_18 = arith.constant 0 : index
      %c0_19 = arith.constant 0 : index
      %20 = vector.load %arg6[%c0_18, %c0_19] : memref<5x1xf32, #tpu.memory_space<vmem>>, vector<5x1xf32>
      %21 = vector.broadcast %20 : vector<5x1xf32> to vector<5x128xf32>
      %22 = arith.addf %19, %21 : vector<5x128xf32>
      %cst_20 = arith.constant dense<0.000000e+00> : vector<128xf32>
      %23 = vector.multi_reduction <add>, %22, %cst_20 [0] : vector<5x128xf32> to vector<128xf32>
      %24 = vector.shape_cast %23 : vector<128xf32> to vector<1x128xf32>
      %cst_21 = arith.constant 2.000000e-01 : f32
      %25 = vector.broadcast %cst_21 : f32 to vector<1x128xf32>
      %26 = arith.mulf %24, %25 : vector<1x128xf32>
      %27 = vector.broadcast %26 : vector<1x128xf32> to vector<5x128xf32>
      %28 = arith.subf %22, %27 : vector<5x128xf32>
      %29 = arith.mulf %28, %28 : vector<5x128xf32>
      %cst_22 = arith.constant dense<0.000000e+00> : vector<128xf32>
      %30 = vector.multi_reduction <add>, %29, %cst_22 [0] : vector<5x128xf32> to vector<128xf32>
      %31 = vector.shape_cast %30 : vector<128xf32> to vector<1x128xf32>
      %cst_23 = arith.constant 2.500000e-01 : f32
      %32 = vector.broadcast %cst_23 : f32 to vector<1x128xf32>
      %33 = arith.mulf %31, %32 : vector<1x128xf32>
      %cst_24 = arith.constant 0.000000e+00 : f32
      %34 = vector.broadcast %cst_24 : f32 to vector<1x128xf32>
      %35 = arith.maximumf %33, %34 : vector<1x128xf32>
      %36 = math.sqrt %35 : vector<1x128xf32>
      %37 = tpu.concatenate %26, %36 in 0 : vector<1x128xf32>, vector<1x128xf32> -> vector<2x128xf32>
      %c0_25 = arith.constant 0 : index
      %c0_26 = arith.constant 0 : index
      %38 = vector.load %arg7[%c0_25, %c0_26] : memref<2x128xf32, #tpu.memory_space<vmem>>, vector<2x128xf32>
      tpu.vector_store %arg7[%c0_25, %c0_26], %37 {strides = array<i32>} : memref<2x128xf32, #tpu.memory_space<vmem>>, vector<2x128xf32>,
    } else {
    }
    return
  }
  func.func @transform_0(%arg0: i32, %arg1: i32) -> (i32, i32) {
    %c0_i32 = arith.constant 0 : i32
    return %arg1, %arg0 : i32, i32
  }
  func.func @transform_1(%arg0: i32, %arg1: i32) -> (i32, i32) {
    %c0_i32 = arith.constant 0 : i32
    %c0_i32_0 = arith.constant 0 : i32
    return %c0_i32, %arg1 : i32, i32
  }
  func.func @transform_2(%arg0: i32, %arg1: i32) -> (i32, i32) {
    %c0_i32 = arith.constant 0 : i32
    %c0_i32_0 = arith.constant 0 : i32
    %c0_i32_1 = arith.constant 0 : i32
    return %c0_i32, %c0_i32_0 : i32, i32
  }
  func.func @transform_3(%arg0: i32, %arg1: i32) -> (i32, i32) {
    %c0_i32 = arith.constant 0 : i32
    %c0_i32_0 = arith.constant 0 : i32
    %c0_i32_1 = arith.constant 0 : i32
    return %c0_i32, %c0_i32_0 : i32, i32
  }
  func.func @transform_4(%arg0: i32, %arg1: i32) -> (i32, i32) {
    %c0_i32 = arith.constant 0 : i32
    %c0_i32_0 = arith.constant 0 : i32
    %c0_i32_1 = arith.constant 0 : i32
    return %c0_i32, %c0_i32_0 : i32, i32
  }
  func.func @transform_5(%arg0: i32, %arg1: i32) -> (i32, i32) {
    %c0_i32 = arith.constant 0 : i32
    %c0_i32_0 = arith.constant 0 : i32
    return %c0_i32, %arg0 : i32, i32
  }
}

</mosaic_0001>

<llo_original>
// kernel: tpu_custom_call.1
$region0: #{tpu_custom_call.1}
  #allocation0 [shape = 'u32[]', space=smem, size = 0x4, offset = 0x4, fixed_abs, tag = 'smem constant byte address 0x4 - core index']
  #allocation1 [shape = 'u32[144,128]{1,0:T(1,128)}', space=vmem, size = 0x12000, scoped, tag = 'internal scratch']
  #allocation2 [shape = 'f32[256,128]{1,0:T(8,128)}', space=vmem, size = 0x20000, scoped, tag = 'scratch operand']
  %s0 = inlined_call_operand.hbm [shape: f32[128,128], index: 0, kind: input, shape index: {}]
  %s1 = inlined_call_operand.vmem [shape: f32[256,128], index: 1, kind: input, shape index: {}]
  %s2 = inlined_call_operand.vmem [shape: f32[256,1], index: 2, kind: input, shape index: {}]
  %s3 = inlined_call_operand.vmem [shape: f32[5,256], index: 3, kind: input, shape index: {}]
  %s4 = inlined_call_operand.vmem [shape: f32[5,1], index: 4, kind: input, shape index: {}]
  %s5 = inlined_call_operand.hbm [shape: f32[2,128], index: 5, kind: output, shape index: {}]
  %s6 = sld [smem:[#allocation0]]
  $region42: #{tpu_custom_call.1} parent=0
    _
  %s8 = ssub.s32 1, %s6
  %s9 = scalar_select 0, %s8, %s6
  $region1: #{tpu_custom_call.1} parent=0
    #allocation3 [shape = 'u8[65536]{0}', space=vmem, size = 0x10000, scoped, tag = 'input window, operand 0, single buffered']
    #allocation4 [shape = 's32[1]{0}', space=sflag, size = 0x4, scoped, tag = 'scoped memory for tpu_custom_call.1']
    #allocation5 [shape = 's32[1]{0}', space=sflag, size = 0x4, scoped, tag = 'scoped memory for tpu_custom_call.1']
    #allocation6 [shape = 'u8[1024]{0}', space=vmem, size = 0x400, scoped, tag = 'output window, operand 0, single buffered']
    %10 = vsyncpa [#allocation4], 0
    %11 = vsyncpa [#allocation5], 0
    // Predicated region
    $region2: #{tpu_custom_call.1} parent=1 // pred_check
      _
    $region3: #{tpu_custom_call.1} parent=1 // pred_check_branch
      %13 = sbr.rel (0) target = $region5
    $region4: #{tpu_custom_call.1} parent=1 // pred_region
      %s15 = ssub.s32 2048, 2048
      %16 = vsyncadd [#allocation4], %s15
      %s17 = sshll.u32 [#allocation3], 4
      %s18 = int_to_ptr.vmem [resolvable:$true] %s17
      %23 = dma.hbm_to_vmem [thread:$0]  %s0, 2048, %s18, [#allocation4], 128, 128, 8
    $region5: #{tpu_custom_call.1} parent=1 // pred_fallthru
      _
    // Predicated region
    $region6: #{tpu_custom_call.1} parent=1 // pred_check
      _
    $region7: #{tpu_custom_call.1} parent=1 // pred_check_branch
      %25 = sbr.rel (0) target = $region9
    $region8: #{tpu_custom_call.1} parent=1 // pred_region
      _
    $region9: #{tpu_custom_call.1} parent=1 // pred_fallthru
      _
    // Predicated region
    $region10: #{tpu_custom_call.1} parent=1 // pred_check
      _
    $region11: #{tpu_custom_call.1} parent=1 // pred_check_branch
      %27 = sbr.rel (0) target = $region13
    $region12: #{tpu_custom_call.1} parent=1 // pred_region
      _
    $region13: #{tpu_custom_call.1} parent=1 // pred_fallthru
      _
    // Predicated region
    $region14: #{tpu_custom_call.1} parent=1 // pred_check
      _
    $region15: #{tpu_custom_call.1} parent=1 // pred_check_branch
      %29 = sbr.rel (0) target = $region17
    $region16: #{tpu_custom_call.1} parent=1 // pred_region
      _
    $region17: #{tpu_custom_call.1} parent=1 // pred_fallthru
      _
    // Predicated region
    $region18: #{tpu_custom_call.1} parent=1 // pred_check
      _
    $region19: #{tpu_custom_call.1} parent=1 // pred_check_branch
      %31 = sbr.rel (0) target = $region21
    $region20: #{tpu_custom_call.1} parent=1 // pred_region
      _
    $region21: #{tpu_custom_call.1} parent=1 // pred_fallthru
      _
    // Predicated region
    $region22: #{tpu_custom_call.1} parent=1 // pred_check
      _
    $region23: #{tpu_custom_call.1} parent=1 // pred_check_branch
      %33 = sbr.rel (0) target = $region25
    $region24: #{tpu_custom_call.1} parent=1 // pred_region
      %34 = dma.done [#allocation4], 2048
    $region25: #{tpu_custom_call.1} parent=1 // pred_fallthru
      _
    %p35 = scmp.eq.s32.totalorder 0, 0
    // Predicated region
    $region26: #{tpu_custom_call.1} parent=1 // pred_check
      %p36 = pneg %p35
    $region27: #{tpu_custom_call.1} parent=1 // pred_check_branch
      %38 = sbr.rel (%p36) target = $region29
    $region28: #{tpu_custom_call.1} parent=1 // pred_region
      %39 = vst [vmem:[#allocation2] sm:$0xff] 0.0
      %40 = vst [vmem:[#allocation2 + $0x8] sm:$0xff] 0.0
      %41 = vst [vmem:[#allocation2 + $0x10] sm:$0xff] 0.0
      %42 = vst [vmem:[#allocation2 + $0x18] sm:$0xff] 0.0
      %43 = vst [vmem:[#allocation2 + $0x20] sm:$0xff] 0.0
      %44 = vst [vmem:[#allocation2 + $0x28] sm:$0xff] 0.0
      %45 = vst [vmem:[#allocation2 + $0x30] sm:$0xff] 0.0
      %46 = vst [vmem:[#allocation2 + $0x38] sm:$0xff] 0.0
      %47 = vst [vmem:[#allocation2 + $0x40] sm:$0xff] 0.0
      %48 = vst [vmem:[#allocation2 + $0x48] sm:$0xff] 0.0
      %49 = vst [vmem:[#allocation2 + $0x50] sm:$0xff] 0.0
      %50 = vst [vmem:[#allocation2 + $0x58] sm:$0xff] 0.0
      %51 = vst [vmem:[#allocation2 + $0x60] sm:$0xff] 0.0
      %52 = vst [vmem:[#allocation2 + $0x68] sm:$0xff] 0.0
      %53 = vst [vmem:[#allocation2 + $0x70] sm:$0xff] 0.0
      %54 = vst [vmem:[#allocation2 + $0x78] sm:$0xff] 0.0
      %55 = vst [vmem:[#allocation2 + $0x80] sm:$0xff] 0.0
      %56 = vst [vmem:[#allocation2 + $0x88] sm:$0xff] 0.0
      %57 = vst [vmem:[#allocation2 + $0x90] sm:$0xff] 0.0
      %58 = vst [vmem:[#allocation2 + $0x98] sm:$0xff] 0.0
      %59 = vst [vmem:[#allocation2 + $0xa0] sm:$0xff] 0.0
      %60 = vst [vmem:[#allocation2 + $0xa8] sm:$0xff] 0.0
      %61 = vst [vmem:[#allocation2 + $0xb0] sm:$0xff] 0.0
      %62 = vst [vmem:[#allocation2 + $0xb8] sm:$0xff] 0.0
      %63 = vst [vmem:[#allocation2 + $0xc0] sm:$0xff] 0.0
      %64 = vst [vmem:[#allocation2 + $0xc8] sm:$0xff] 0.0
      %65 = vst [vmem:[#allocation2 + $0xd0] sm:$0xff] 0.0
      %66 = vst [vmem:[#allocation2 + $0xd8] sm:$0xff] 0.0
      %67 = vst [vmem:[#allocation2 + $0xe0] sm:$0xff] 0.0
      %68 = vst [vmem:[#allocation2 + $0xe8] sm:$0xff] 0.0
      %69 = vst [vmem:[#allocation2 + $0xf0] sm:$0xff] 0.0
      %70 = vst [vmem:[#allocation2 + $0xf8] sm:$0xff] 0.0
    $region29: #{tpu_custom_call.1} parent=1 // pred_fallthru
      _
    %v71 = vld [vmem:[#allocation2] sm:$0xff]
    %v72 = vld [vmem:[#allocation2 + $0x8] sm:$0xff]
    %v73 = vld [vmem:[#allocation2 + $0x10] sm:$0xff]
    %v74 = vld [vmem:[#allocation2 + $0x18] sm:$0xff]
    %v75 = vld [vmem:[#allocation2 + $0x20] sm:$0xff]
    %v76 = vld [vmem:[#allocation2 + $0x28] sm:$0xff]
    %v77 = vld [vmem:[#allocation2 + $0x30] sm:$0xff]
    %v78 = vld [vmem:[#allocation2 + $0x38] sm:$0xff]
    %v79 = vld [vmem:[#allocation2 + $0x40] sm:$0xff]
    %v80 = vld [vmem:[#allocation2 + $0x48] sm:$0xff]
    %v81 = vld [vmem:[#allocation2 + $0x50] sm:$0xff]
    %v82 = vld [vmem:[#allocation2 + $0x58] sm:$0xff]
    %v83 = vld [vmem:[#allocation2 + $0x60] sm:$0xff]
    %v84 = vld [vmem:[#allocation2 + $0x68] sm:$0xff]
    %v85 = vld [vmem:[#allocation2 + $0x70] sm:$0xff]
    %v86 = vld [vmem:[#allocation2 + $0x78] sm:$0xff]
    %v87 = vld [vmem:[#allocation2 + $0x80] sm:$0xff]
    %v88 = vld [vmem:[#allocation2 + $0x88] sm:$0xff]
    %v89 = vld [vmem:[#allocation2 + $0x90] sm:$0xff]
    %v90 = vld [vmem:[#allocation2 + $0x98] sm:$0xff]
    %v91 = vld [vmem:[#allocation2 + $0xa0] sm:$0xff]
    %v92 = vld [vmem:[#allocation2 + $0xa8] sm:$0xff]
    %v93 = vld [vmem:[#allocation2 + $0xb0] sm:$0xff]
    %v94 = vld [vmem:[#allocation2 + $0xb8] sm:$0xff]
    %v95 = vld [vmem:[#allocation2 + $0xc0] sm:$0xff]
    %v96 = vld [vmem:[#allocation2 + $0xc8] sm:$0xff]
    %v97 = vld [vmem:[#allocation2 + $0xd0] sm:$0xff]
    %v98 = vld [vmem:[#allocation2 + $0xd8] sm:$0xff]
    %v99 = vld [vmem:[#allocation2 + $0xe0] sm:$0xff]
    %v100 = vld [vmem:[#allocation2 + $0xe8] sm:$0xff]
    %v101 = vld [vmem:[#allocation2 + $0xf0] sm:$0xff]
    %v102 = vld [vmem:[#allocation2 + $0xf8] sm:$0xff]
    %v103 = vld [vmem:[%s1] sm:$0xff]
    %v104 = vld [vmem:[%s1 + $0x8] sm:$0xff]
    %v105 = vld [vmem:[%s1 + $0x10] sm:$0xff]
    %v106 = vld [vmem:[%s1 + $0x18] sm:$0xff]
    %v107 = vld [vmem:[%s1 + $0x20] sm:$0xff]
    %v108 = vld [vmem:[%s1 + $0x28] sm:$0xff]
    %v109 = vld [vmem:[%s1 + $0x30] sm:$0xff]
    %v110 = vld [vmem:[%s1 + $0x38] sm:$0xff]
    %v111 = vld [vmem:[%s1 + $0x40] sm:$0xff]
    %v112 = vld [vmem:[%s1 + $0x48] sm:$0xff]
    %v113 = vld [vmem:[%s1 + $0x50] sm:$0xff]
    %v114 = vld [vmem:[%s1 + $0x58] sm:$0xff]
    %v115 = vld [vmem:[%s1 + $0x60] sm:$0xff]
    %v116 = vld [vmem:[%s1 + $0x68] sm:$0xff]
    %v117 = vld [vmem:[%s1 + $0x70] sm:$0xff]
    %v118 = vld [vmem:[%s1 + $0x78] sm:$0xff]
    %v119 = vld [vmem:[%s1 + $0x80] sm:$0xff]
    %v120 = vld [vmem:[%s1 + $0x88] sm:$0xff]
    %v121 = vld [vmem:[%s1 + $0x90] sm:$0xff]
    %v122 = vld [vmem:[%s1 + $0x98] sm:$0xff]
    %v123 = vld [vmem:[%s1 + $0xa0] sm:$0xff]
    %v124 = vld [vmem:[%s1 + $0xa8] sm:$0xff]
    %v125 = vld [vmem:[%s1 + $0xb0] sm:$0xff]
    %v126 = vld [vmem:[%s1 + $0xb8] sm:$0xff]
    %v127 = vld [vmem:[%s1 + $0xc0] sm:$0xff]
    %v128 = vld [vmem:[%s1 + $0xc8] sm:$0xff]
    %v129 = vld [vmem:[%s1 + $0xd0] sm:$0xff]
    %v130 = vld [vmem:[%s1 + $0xd8] sm:$0xff]
    %v131 = vld [vmem:[%s1 + $0xe0] sm:$0xff]
    %v132 = vld [vmem:[%s1 + $0xe8] sm:$0xff]
    %v133 = vld [vmem:[%s1 + $0xf0] sm:$0xff]
    %v134 = vld [vmem:[%s1 + $0xf8] sm:$0xff]
    %v135 = vld [vmem:[#allocation3] sm:$0xff]
    %v136 = vld [vmem:[#allocation3 + $0x8] sm:$0xff]
    %v137 = vld [vmem:[#allocation3 + $0x10] sm:$0xff]
    %v138 = vld [vmem:[#allocation3 + $0x18] sm:$0xff]
    %v139 = vld [vmem:[#allocation3 + $0x20] sm:$0xff]
    %v140 = vld [vmem:[#allocation3 + $0x28] sm:$0xff]
    %v141 = vld [vmem:[#allocation3 + $0x30] sm:$0xff]
    %v142 = vld [vmem:[#allocation3 + $0x38] sm:$0xff]
    %v143 = vld [vmem:[#allocation3 + $0x40] sm:$0xff]
    %v144 = vld [vmem:[#allocation3 + $0x48] sm:$0xff]
    %v145 = vld [vmem:[#allocation3 + $0x50] sm:$0xff]
    %v146 = vld [vmem:[#allocation3 + $0x58] sm:$0xff]
    %v147 = vld [vmem:[#allocation3 + $0x60] sm:$0xff]
    %v148 = vld [vmem:[#allocation3 + $0x68] sm:$0xff]
    %v149 = vld [vmem:[#allocation3 + $0x70] sm:$0xff]
    %v150 = vld [vmem:[#allocation3 + $0x78] sm:$0xff]
    %151 = vmatprep.subr.mxu0 0.0
    %152 = vmatpush1.msra.mxu0 %v135
    %153 = vmatprep.subr.mxu0 0.0
    %154 = vmatpush1.msra.mxu0 %v136
    %155 = vmatprep.subr.mxu0 0.0
    %156 = vmatpush1.msra.mxu0 %v137
    %157 = vmatprep.subr.mxu0 0.0
    %158 = vmatpush1.msra.mxu0 %v138
    %159 = vmatprep.subr.mxu0 0.0
    %160 = vmatpush1.msra.mxu0 %v139
    %161 = vmatprep.subr.mxu0 0.0
    %162 = vmatpush1.msra.mxu0 %v140
    %163 = vmatprep.subr.mxu0 0.0
    %164 = vmatpush1.msra.mxu0 %v141
    %165 = vmatprep.subr.mxu0 0.0
    %166 = vmatpush1.msra.mxu0 %v142
    %167 = vmatprep.subr.mxu0 0.0
    %168 = vmatpush1.msra.mxu0 %v143
    %169 = vmatprep.subr.mxu0 0.0
    %170 = vmatpush1.msra.mxu0 %v144
    %171 = vmatprep.subr.mxu0 0.0
    %172 = vmatpush1.msra.mxu0 %v145
    %173 = vmatprep.subr.mxu0 0.0
    %174 = vmatpush1.msra.mxu0 %v146
    %175 = vmatprep.subr.mxu0 0.0
    %176 = vmatpush1.msra.mxu0 %v147
    %177 = vmatprep.subr.mxu0 0.0
    %178 = vmatpush1.msra.mxu0 %v148
    %179 = vmatprep.subr.mxu0 0.0
    %180 = vmatpush1.msra.mxu0 %v149
    %181 = vmatprep.subr.mxu0 0.0
    %182 = vmatpush1.msra.mxu0 %v150
    %183 = vmatprep.subr.mxu0 0.0
    %184 = vmatpush1.msra.mxu0 0.0
    %185 = vmatprep.subr.mxu0 0.0
    %186 = vmatpush1.msra.mxu0 0.0
    %187 = vmatprep.subr.mxu0 0.0
    %188 = vmatpush1.msra.mxu0 0.0
    %189 = vmatprep.subr.mxu0 0.0
    %190 = vmatpush1.msra.mxu0 0.0
    %191 = vmatprep.subr.mxu0 0.0
    %192 = vmatpush1.msra.mxu0 0.0
    %193 = vmatprep.subr.mxu0 0.0
    %194 = vmatpush1.msra.mxu0 0.0
    %195 = vmatprep.subr.mxu0 0.0
    %196 = vmatpush1.msra.mxu0 0.0
    %197 = vmatprep.subr.mxu0 0.0
    %198 = vmatpush1.msra.mxu0 0.0
    %199 = vmatprep.subr.mxu0 0.0
    %200 = vmatpush1.msra.mxu0 0.0
    %201 = vmatprep.subr.mxu0 0.0
    %202 = vmatpush1.msra.mxu0 0.0
    %203 = vmatprep.subr.mxu0 0.0
    %204 = vmatpush1.msra.mxu0 0.0
    %205 = vmatprep.subr.mxu0 0.0
    %206 = vmatpush1.msra.mxu0 0.0
    %207 = vmatprep.subr.mxu0 0.0
    %208 = vmatpush1.msra.mxu0 0.0
    %209 = vmatprep.subr.mxu0 0.0
    %210 = vmatpush1.msra.mxu0 0.0
    %211 = vmatprep.subr.mxu0 0.0
    %212 = vmatpush1.msra.mxu0 0.0
    %213 = vmatprep.subr.mxu0 0.0
    %214 = vmatpush1.msra.mxu0 0.0
    %215 = vmatprep.mubr.f32.mxu0 0.0
    %216 = vmatmul.mubr.f32.gmra.mrb[0].mxu0 %v103
    %v217 = vpop.f32.mrb[0].mxu0
    %v218 = vadd.f32 0.0, %v217
    %v219 = vpop.f32.mrb[0].mxu0
    %220 = vmatprep.mubr.f32.mxu0 0.0
    %221 = vmatmul.mubr.f32.gmra.mrb[0].mxu0 %v104
    %v222 = vpop.f32.mrb[0].mxu0
    %v223 = vadd.f32 0.0, %v222
    %v224 = vpop.f32.mrb[0].mxu0
    %225 = vmatprep.mubr.f32.mxu0 0.0
    %226 = vmatmul.mubr.f32.gmra.mrb[0].mxu0 %v105
    %v227 = vpop.f32.mrb[0].mxu0
    %v228 = vadd.f32 0.0, %v227
    %v229 = vpop.f32.mrb[0].mxu0
    %230 = vmatprep.mubr.f32.mxu0 0.0
    %231 = vmatmul.mubr.f32.gmra.mrb[0].mxu0 %v106
    %v232 = vpop.f32.mrb[0].mxu0
    %v233 = vadd.f32 0.0, %v232
    %v234 = vpop.f32.mrb[0].mxu0
    %235 = vmatprep.mubr.f32.mxu0 0.0
    %236 = vmatmul.mubr.f32.gmra.mrb[0].mxu0 %v107
    %v237 = vpop.f32.mrb[0].mxu0
    %v238 = vadd.f32 0.0, %v237
    %v239 = vpop.f32.mrb[0].mxu0
    %240 = vmatprep.mubr.f32.mxu0 0.0
    %241 = vmatmul.mubr.f32.gmra.mrb[0].mxu0 %v108
    %v242 = vpop.f32.mrb[0].mxu0
    %v243 = vadd.f32 0.0, %v242
    %v244 = vpop.f32.mrb[0].mxu0
    %245 = vmatprep.mubr.f32.mxu0 0.0
    %246 = vmatmul.mubr.f32.gmra.mrb[0].mxu0 %v109
    %v247 = vpop.f32.mrb[0].mxu0
    %v248 = vadd.f32 0.0, %v247
    %v249 = vpop.f32.mrb[0].mxu0
    %250 = vmatprep.mubr.f32.mxu0 0.0
    %251 = vmatmul.mubr.f32.gmra.mrb[0].mxu0 %v110
    %v252 = vpop.f32.mrb[0].mxu0
    %v253 = vadd.f32 0.0, %v252
    %v254 = vpop.f32.mrb[0].mxu0
    %255 = vmatprep.mubr.f32.mxu0 0.0
    %256 = vmatmul.mubr.f32.gmra.mrb[0].mxu0 %v111
    %v257 = vpop.f32.mrb[0].mxu0
    %v258 = vadd.f32 0.0, %v257
    %v259 = vpop.f32.mrb[0].mxu0
    %260 = vmatprep.mubr.f32.mxu0 0.0
    %261 = vmatmul.mubr.f32.gmra.mrb[0].mxu0 %v112
    %v262 = vpop.f32.mrb[0].mxu0
    %v263 = vadd.f32 0.0, %v262
    %v264 = vpop.f32.mrb[0].mxu0
    %265 = vmatprep.mubr.f32.mxu0 0.0
    %266 = vmatmul.mubr.f32.gmra.mrb[0].mxu0 %v113
    %v267 = vpop.f32.mrb[0].mxu0
    %v268 = vadd.f32 0.0, %v267
    %v269 = vpop.f32.mrb[0].mxu0
    %270 = vmatprep.mubr.f32.mxu0 0.0
    %271 = vmatmul.mubr.f32.gmra.mrb[0].mxu0 %v114
    %v272 = vpop.f32.mrb[0].mxu0
    %v273 = vadd.f32 0.0, %v272
    %v274 = vpop.f32.mrb[0].mxu0
    %275 = vmatprep.mubr.f32.mxu0 0.0
    %276 = vmatmul.mubr.f32.gmra.mrb[0].mxu0 %v115
    %v277 = vpop.f32.mrb[0].mxu0
    %v278 = vadd.f32 0.0, %v277
    %v279 = vpop.f32.mrb[0].mxu0
    %280 = vmatprep.mubr.f32.mxu0 0.0
    %281 = vmatmul.mubr.f32.gmra.mrb[0].mxu0 %v116
    %v282 = vpop.f32.mrb[0].mxu0
    %v283 = vadd.f32 0.0, %v282
    %v284 = vpop.f32.mrb[0].mxu0
    %285 = vmatprep.mubr.f32.mxu0 0.0
    %286 = vmatmul.mubr.f32.gmra.mrb[0].mxu0 %v117
    %v287 = vpop.f32.mrb[0].mxu0
    %v288 = vadd.f32 0.0, %v287
    %v289 = vpop.f32.mrb[0].mxu0
    %290 = vmatprep.mubr.f32.mxu0 0.0
    %291 = vmatmul.mubr.f32.gmra.mrb[0].mxu0 %v118
    %v292 = vpop.f32.mrb[0].mxu0
    %v293 = vadd.f32 0.0, %v292
    %v294 = vpop.f32.mrb[0].mxu0
    %295 = vmatprep.mubr.f32.mxu0 0.0
    %296 = vmatmul.mubr.f32.gmra.mrb[0].mxu0 %v119
    %v297 = vpop.f32.mrb[0].mxu0
    %v298 = vadd.f32 0.0, %v297
    %v299 = vpop.f32.mrb[0].mxu0
    %300 = vmatprep.mubr.f32.mxu0 0.0
    %301 = vmatmul.mubr.f32.gmra.mrb[0].mxu0 %v120
    %v302 = vpop.f32.mrb[0].mxu0
    %v303 = vadd.f32 0.0, %v302
    %v304 = vpop.f32.mrb[0].mxu0
    %305 = vmatprep.mubr.f32.mxu0 0.0
    %306 = vmatmul.mubr.f32.gmra.mrb[0].mxu0 %v121
    %v307 = vpop.f32.mrb[0].mxu0
    %v308 = vadd.f32 0.0, %v307
    %v309 = vpop.f32.mrb[0].mxu0
    %310 = vmatprep.mubr.f32.mxu0 0.0
    %311 = vmatmul.mubr.f32.gmra.mrb[0].mxu0 %v122
    %v312 = vpop.f32.mrb[0].mxu0
    %v313 = vadd.f32 0.0, %v312
    %v314 = vpop.f32.mrb[0].mxu0
    %315 = vmatprep.mubr.f32.mxu0 0.0
    %316 = vmatmul.mubr.f32.gmra.mrb[0].mxu0 %v123
    %v317 = vpop.f32.mrb[0].mxu0
    %v318 = vadd.f32 0.0, %v317
    %v319 = vpop.f32.mrb[0].mxu0
    %320 = vmatprep.mubr.f32.mxu0 0.0
    %321 = vmatmul.mubr.f32.gmra.mrb[0].mxu0 %v124
    %v322 = vpop.f32.mrb[0].mxu0
    %v323 = vadd.f32 0.0, %v322
    %v324 = vpop.f32.mrb[0].mxu0
    %325 = vmatprep.mubr.f32.mxu0 0.0
    %326 = vmatmul.mubr.f32.gmra.mrb[0].mxu0 %v125
    %v327 = vpop.f32.mrb[0].mxu0
    %v328 = vadd.f32 0.0, %v327
    %v329 = vpop.f32.mrb[0].mxu0
    %330 = vmatprep.mubr.f32.mxu0 0.0
    %331 = vmatmul.mubr.f32.gmra.mrb[0].mxu0 %v126
    %v332 = vpop.f32.mrb[0].mxu0
    %v333 = vadd.f32 0.0, %v332
    %v334 = vpop.f32.mrb[0].mxu0
    %335 = vmatprep.mubr.f32.mxu0 0.0
    %336 = vmatmul.mubr.f32.gmra.mrb[0].mxu0 %v127
    %v337 = vpop.f32.mrb[0].mxu0
    %v338 = vadd.f32 0.0, %v337
    %v339 = vpop.f32.mrb[0].mxu0
    %340 = vmatprep.mubr.f32.mxu0 0.0
    %341 = vmatmul.mubr.f32.gmra.mrb[0].mxu0 %v128
    %v342 = vpop.f32.mrb[0].mxu0
    %v343 = vadd.f32 0.0, %v342
    %v344 = vpop.f32.mrb[0].mxu0
    %345 = vmatprep.mubr.f32.mxu0 0.0
    %346 = vmatmul.mubr.f32.gmra.mrb[0].mxu0 %v129
    %v347 = vpop.f32.mrb[0].mxu0
    %v348 = vadd.f32 0.0, %v347
    %v349 = vpop.f32.mrb[0].mxu0
    %350 = vmatprep.mubr.f32.mxu0 0.0
    %351 = vmatmul.mubr.f32.gmra.mrb[0].mxu0 %v130
    %v352 = vpop.f32.mrb[0].mxu0
    %v353 = vadd.f32 0.0, %v352
    %v354 = vpop.f32.mrb[0].mxu0
    %355 = vmatprep.mubr.f32.mxu0 0.0
    %356 = vmatmul.mubr.f32.gmra.mrb[0].mxu0 %v131
    %v357 = vpop.f32.mrb[0].mxu0
    %v358 = vadd.f32 0.0, %v357
    %v359 = vpop.f32.mrb[0].mxu0
    %360 = vmatprep.mubr.f32.mxu0 0.0
    %361 = vmatmul.mubr.f32.gmra.mrb[0].mxu0 %v132
    %v362 = vpop.f32.mrb[0].mxu0
    %v363 = vadd.f32 0.0, %v362
    %v364 = vpop.f32.mrb[0].mxu0
    %365 = vmatprep.mubr.f32.mxu0 0.0
    %366 = vmatmul.mubr.f32.gmra.mrb[0].mxu0 %v133
    %v367 = vpop.f32.mrb[0].mxu0
    %v368 = vadd.f32 0.0, %v367
    %v369 = vpop.f32.mrb[0].mxu0
    %370 = vmatprep.mubr.f32.mxu0 0.0
    %371 = vmatmul.mubr.f32.gmra.mrb[0].mxu0 %v134
    %v372 = vpop.f32.mrb[0].mxu0
    %v373 = vadd.f32 0.0, %v372
    %v374 = vpop.f32.mrb[0].mxu0
    %375 = vdwg.mxu0
    %v376 = vadd.f32 %v71, %v218
    %v377 = vadd.f32 %v72, %v223
    %v378 = vadd.f32 %v73, %v228
    %v379 = vadd.f32 %v74, %v233
    %v380 = vadd.f32 %v75, %v238
    %v381 = vadd.f32 %v76, %v243
    %v382 = vadd.f32 %v77, %v248
    %v383 = vadd.f32 %v78, %v253
    %v384 = vadd.f32 %v79, %v258
    %v385 = vadd.f32 %v80, %v263
    %v386 = vadd.f32 %v81, %v268
    %v387 = vadd.f32 %v82, %v273
    %v388 = vadd.f32 %v83, %v278
    %v389 = vadd.f32 %v84, %v283
    %v390 = vadd.f32 %v85, %v288
    %v391 = vadd.f32 %v86, %v293
    %v392 = vadd.f32 %v87, %v298
    %v393 = vadd.f32 %v88, %v303
    %v394 = vadd.f32 %v89, %v308
    %v395 = vadd.f32 %v90, %v313
    %v396 = vadd.f32 %v91, %v318
    %v397 = vadd.f32 %v92, %v323
    %v398 = vadd.f32 %v93, %v328
    %v399 = vadd.f32 %v94, %v333
    %v400 = vadd.f32 %v95, %v338
    %v401 = vadd.f32 %v96, %v343
    %v402 = vadd.f32 %v97, %v348
    %v403 = vadd.f32 %v98, %v353
    %v404 = vadd.f32 %v99, %v358
    %v405 = vadd.f32 %v100, %v363
    %v406 = vadd.f32 %v101, %v368
    %v407 = vadd.f32 %v102, %v373
    %408 = vst [vmem:[#allocation2] sm:$0xff] %v376
    %409 = vst [vmem:[#allocation2 + $0x8] sm:$0xff] %v377
    %410 = vst [vmem:[#allocation2 + $0x10] sm:$0xff] %v378
    %411 = vst [vmem:[#allocation2 + $0x18] sm:$0xff] %v379
    %412 = vst [vmem:[#allocation2 + $0x20] sm:$0xff] %v380
    %413 = vst [vmem:[#allocation2 + $0x28] sm:$0xff] %v381
    %414 = vst [vmem:[#allocation2 + $0x30] sm:$0xff] %v382
    %415 = vst [vmem:[#allocation2 + $0x38] sm:$0xff] %v383
    %416 = vst [vmem:[#allocation2 + $0x40] sm:$0xff] %v384
    %417 = vst [vmem:[#allocation2 + $0x48] sm:$0xff] %v385
    %418 = vst [vmem:[#allocation2 + $0x50] sm:$0xff] %v386
    %419 = vst [vmem:[#allocation2 + $0x58] sm:$0xff] %v387
    %420 = vst [vmem:[#allocation2 + $0x60] sm:$0xff] %v388
    %421 = vst [vmem:[#allocation2 + $0x68] sm:$0xff] %v389
    %422 = vst [vmem:[#allocation2 + $0x70] sm:$0xff] %v390
    %423 = vst [vmem:[#allocation2 + $0x78] sm:$0xff] %v391
    %424 = vst [vmem:[#allocation2 + $0x80] sm:$0xff] %v392
    %425 = vst [vmem:[#allocation2 + $0x88] sm:$0xff] %v393
    %426 = vst [vmem:[#allocation2 + $0x90] sm:$0xff] %v394
    %427 = vst [vmem:[#allocation2 + $0x98] sm:$0xff] %v395
    %428 = vst [vmem:[#allocation2 + $0xa0] sm:$0xff] %v396
    %429 = vst [vmem:[#allocation2 + $0xa8] sm:$0xff] %v397
    %430 = vst [vmem:[#allocation2 + $0xb0] sm:$0xff] %v398
    %431 = vst [vmem:[#allocation2 + $0xb8] sm:$0xff] %v399
    %432 = vst [vmem:[#allocation2 + $0xc0] sm:$0xff] %v400
    %433 = vst [vmem:[#allocation2 + $0xc8] sm:$0xff] %v401
    %434 = vst [vmem:[#allocation2 + $0xd0] sm:$0xff] %v402
    %435 = vst [vmem:[#allocation2 + $0xd8] sm:$0xff] %v403
    %436 = vst [vmem:[#allocation2 + $0xe0] sm:$0xff] %v404
    %437 = vst [vmem:[#allocation2 + $0xe8] sm:$0xff] %v405
    %438 = vst [vmem:[#allocation2 + $0xf0] sm:$0xff] %v406
    %439 = vst [vmem:[#allocation2 + $0xf8] sm:$0xff] %v407
    // Predicated region
    $region30: #{tpu_custom_call.1} parent=1 // pred_check
      %p440 = pneg %p35
    $region31: #{tpu_custom_call.1} parent=1 // pred_check_branch
      %442 = sbr.rel (%p440) target = $region33
    $region32: #{tpu_custom_call.1} parent=1 // pred_region
      %v443 = vld [vmem:[#allocation2] sm:$0xff]
      %v444 = vld [vmem:[#allocation2 + $0x8] sm:$0xff]
      %v445 = vld [vmem:[#allocation2 + $0x10] sm:$0xff]
      %v446 = vld [vmem:[#allocation2 + $0x18] sm:$0xff]
      %v447 = vld [vmem:[#allocation2 + $0x20] sm:$0xff]
      %v448 = vld [vmem:[#allocation2 + $0x28] sm:$0xff]
      %v449 = vld [vmem:[#allocation2 + $0x30] sm:$0xff]
      %v450 = vld [vmem:[#allocation2 + $0x38] sm:$0xff]
      %v451 = vld [vmem:[#allocation2 + $0x40] sm:$0xff]
      %v452 = vld [vmem:[#allocation2 + $0x48] sm:$0xff]
      %v453 = vld [vmem:[#allocation2 + $0x50] sm:$0xff]
      %v454 = vld [vmem:[#allocation2 + $0x58] sm:$0xff]
      %v455 = vld [vmem:[#allocation2 + $0x60] sm:$0xff]
      %v456 = vld [vmem:[#allocation2 + $0x68] sm:$0xff]
      %v457 = vld [vmem:[#allocation2 + $0x70] sm:$0xff]
      %v458 = vld [vmem:[#allocation2 + $0x78] sm:$0xff]
      %v459 = vld [vmem:[#allocation2 + $0x80] sm:$0xff]
      %v460 = vld [vmem:[#allocation2 + $0x88] sm:$0xff]
      %v461 = vld [vmem:[#allocation2 + $0x90] sm:$0xff]
      %v462 = vld [vmem:[#allocation2 + $0x98] sm:$0xff]
      %v463 = vld [vmem:[#allocation2 + $0xa0] sm:$0xff]
      %v464 = vld [vmem:[#allocation2 + $0xa8] sm:$0xff]
      %v465 = vld [vmem:[#allocation2 + $0xb0] sm:$0xff]
      %v466 = vld [vmem:[#allocation2 + $0xb8] sm:$0xff]
      %v467 = vld [vmem:[#allocation2 + $0xc0] sm:$0xff]
      %v468 = vld [vmem:[#allocation2 + $0xc8] sm:$0xff]
      %v469 = vld [vmem:[#allocation2 + $0xd0] sm:$0xff]
      %v470 = vld [vmem:[#allocation2 + $0xd8] sm:$0xff]
      %v471 = vld [vmem:[#allocation2 + $0xe0] sm:$0xff]
      %v472 = vld [vmem:[#allocation2 + $0xe8] sm:$0xff]
      %v473 = vld [vmem:[#allocation2 + $0xf0] sm:$0xff]
      %v474 = vld [vmem:[#allocation2 + $0xf8] sm:$0xff]
      %v475 = vld [vmem:[%s2] sm:$0xff]
      %v476 = vld [vmem:[%s2 + $0x8] sm:$0xff]
      %v477 = vld [vmem:[%s2 + $0x10] sm:$0xff]
      %v478 = vld [vmem:[%s2 + $0x18] sm:$0xff]
      %v479 = vld [vmem:[%s2 + $0x20] sm:$0xff]
      %v480 = vld [vmem:[%s2 + $0x28] sm:$0xff]
      %v481 = vld [vmem:[%s2 + $0x30] sm:$0xff]
      %v482 = vld [vmem:[%s2 + $0x38] sm:$0xff]
      %v483 = vld [vmem:[%s2 + $0x40] sm:$0xff]
      %v484 = vld [vmem:[%s2 + $0x48] sm:$0xff]
      %v485 = vld [vmem:[%s2 + $0x50] sm:$0xff]
      %v486 = vld [vmem:[%s2 + $0x58] sm:$0xff]
      %v487 = vld [vmem:[%s2 + $0x60] sm:$0xff]
      %v488 = vld [vmem:[%s2 + $0x68] sm:$0xff]
      %v489 = vld [vmem:[%s2 + $0x70] sm:$0xff]
      %v490 = vld [vmem:[%s2 + $0x78] sm:$0xff]
      %v491 = vld [vmem:[%s2 + $0x80] sm:$0xff]
      %v492 = vld [vmem:[%s2 + $0x88] sm:$0xff]
      %v493 = vld [vmem:[%s2 + $0x90] sm:$0xff]
      %v494 = vld [vmem:[%s2 + $0x98] sm:$0xff]
      %v495 = vld [vmem:[%s2 + $0xa0] sm:$0xff]
      %v496 = vld [vmem:[%s2 + $0xa8] sm:$0xff]
      %v497 = vld [vmem:[%s2 + $0xb0] sm:$0xff]
      %v498 = vld [vmem:[%s2 + $0xb8] sm:$0xff]
      %v499 = vld [vmem:[%s2 + $0xc0] sm:$0xff]
      %v500 = vld [vmem:[%s2 + $0xc8] sm:$0xff]
      %v501 = vld [vmem:[%s2 + $0xd0] sm:$0xff]
      %v502 = vld [vmem:[%s2 + $0xd8] sm:$0xff]
      %v503 = vld [vmem:[%s2 + $0xe0] sm:$0xff]
      %v504 = vld [vmem:[%s2 + $0xe8] sm:$0xff]
      %v505 = vld [vmem:[%s2 + $0xf0] sm:$0xff]
      %v506 = vld [vmem:[%s2 + $0xf8] sm:$0xff]
      %508 = vset.pattern.permute.xlu0 0
      %509 = vperm.xlu0 %508, %v475
      %v510 = vpop.permute.xlu0 %509
      %513 = vset.pattern.permute.xlu0 0
      %514 = vperm.xlu0 %513, %v476
      %v515 = vpop.permute.xlu0 %514
      %518 = vset.pattern.permute.xlu0 0
      %519 = vperm.xlu0 %518, %v477
      %v520 = vpop.permute.xlu0 %519
      %523 = vset.pattern.permute.xlu0 0
      %524 = vperm.xlu0 %523, %v478
      %v525 = vpop.permute.xlu0 %524
      %528 = vset.pattern.permute.xlu0 0
      %529 = vperm.xlu0 %528, %v479
      %v530 = vpop.permute.xlu0 %529
      %533 = vset.pattern.permute.xlu0 0
      %534 = vperm.xlu0 %533, %v480
      %v535 = vpop.permute.xlu0 %534
      %538 = vset.pattern.permute.xlu0 0
      %539 = vperm.xlu0 %538, %v481
      %v540 = vpop.permute.xlu0 %539
      %543 = vset.pattern.permute.xlu0 0
      %544 = vperm.xlu0 %543, %v482
      %v545 = vpop.permute.xlu0 %544
      %548 = vset.pattern.permute.xlu0 0
      %549 = vperm.xlu0 %548, %v483
      %v550 = vpop.permute.xlu0 %549
      %553 = vset.pattern.permute.xlu0 0
      %554 = vperm.xlu0 %553, %v484
      %v555 = vpop.permute.xlu0 %554
      %558 = vset.pattern.permute.xlu0 0
      %559 = vperm.xlu0 %558, %v485
      %v560 = vpop.permute.xlu0 %559
      %563 = vset.pattern.permute.xlu0 0
      %564 = vperm.xlu0 %563, %v486
      %v565 = vpop.permute.xlu0 %564
      %568 = vset.pattern.permute.xlu0 0
      %569 = vperm.xlu0 %568, %v487
      %v570 = vpop.permute.xlu0 %569
      %573 = vset.pattern.permute.xlu0 0
      %574 = vperm.xlu0 %573, %v488
      %v575 = vpop.permute.xlu0 %574
      %578 = vset.pattern.permute.xlu0 0
      %579 = vperm.xlu0 %578, %v489
      %v580 = vpop.permute.xlu0 %579
      %583 = vset.pattern.permute.xlu0 0
      %584 = vperm.xlu0 %583, %v490
      %v585 = vpop.permute.xlu0 %584
      %588 = vset.pattern.permute.xlu0 0
      %589 = vperm.xlu0 %588, %v491
      %v590 = vpop.permute.xlu0 %589
      %593 = vset.pattern.permute.xlu0 0
      %594 = vperm.xlu0 %593, %v492
      %v595 = vpop.permute.xlu0 %594
      %598 = vset.pattern.permute.xlu0 0
      %599 = vperm.xlu0 %598, %v493
      %v600 = vpop.permute.xlu0 %599
      %603 = vset.pattern.permute.xlu0 0
      %604 = vperm.xlu0 %603, %v494
      %v605 = vpop.permute.xlu0 %604
      %608 = vset.pattern.permute.xlu0 0
      %609 = vperm.xlu0 %608, %v495
      %v610 = vpop.permute.xlu0 %609
      %613 = vset.pattern.permute.xlu0 0
      %614 = vperm.xlu0 %613, %v496
      %v615 = vpop.permute.xlu0 %614
      %618 = vset.pattern.permute.xlu0 0
      %619 = vperm.xlu0 %618, %v497
      %v620 = vpop.permute.xlu0 %619
      %623 = vset.pattern.permute.xlu0 0
      %624 = vperm.xlu0 %623, %v498
      %v625 = vpop.permute.xlu0 %624
      %628 = vset.pattern.permute.xlu0 0
      %629 = vperm.xlu0 %628, %v499
      %v630 = vpop.permute.xlu0 %629
      %633 = vset.pattern.permute.xlu0 0
      %634 = vperm.xlu0 %633, %v500
      %v635 = vpop.permute.xlu0 %634
      %638 = vset.pattern.permute.xlu0 0
      %639 = vperm.xlu0 %638, %v501
      %v640 = vpop.permute.xlu0 %639
      %643 = vset.pattern.permute.xlu0 0
      %644 = vperm.xlu0 %643, %v502
      %v645 = vpop.permute.xlu0 %644
      %648 = vset.pattern.permute.xlu0 0
      %649 = vperm.xlu0 %648, %v503
      %v650 = vpop.permute.xlu0 %649
      %653 = vset.pattern.permute.xlu0 0
      %654 = vperm.xlu0 %653, %v504
      %v655 = vpop.permute.xlu0 %654
      %658 = vset.pattern.permute.xlu0 0
      %659 = vperm.xlu0 %658, %v505
      %v660 = vpop.permute.xlu0 %659
      %663 = vset.pattern.permute.xlu0 0
      %664 = vperm.xlu0 %663, %v506
      %v665 = vpop.permute.xlu0 %664
      %v667 = vadd.f32 %v443, %v510
      %v668 = vadd.f32 %v444, %v515
      %v669 = vadd.f32 %v445, %v520
      %v670 = vadd.f32 %v446, %v525
      %v671 = vadd.f32 %v447, %v530
      %v672 = vadd.f32 %v448, %v535
      %v673 = vadd.f32 %v449, %v540
      %v674 = vadd.f32 %v450, %v545
      %v675 = vadd.f32 %v451, %v550
      %v676 = vadd.f32 %v452, %v555
      %v677 = vadd.f32 %v453, %v560
      %v678 = vadd.f32 %v454, %v565
      %v679 = vadd.f32 %v455, %v570
      %v680 = vadd.f32 %v456, %v575
      %v681 = vadd.f32 %v457, %v580
      %v682 = vadd.f32 %v458, %v585
      %v683 = vadd.f32 %v459, %v590
      %v684 = vadd.f32 %v460, %v595
      %v685 = vadd.f32 %v461, %v600
      %v686 = vadd.f32 %v462, %v605
      %v687 = vadd.f32 %v463, %v610
      %v688 = vadd.f32 %v464, %v615
      %v689 = vadd.f32 %v465, %v620
      %v690 = vadd.f32 %v466, %v625
      %v691 = vadd.f32 %v467, %v630
      %v692 = vadd.f32 %v468, %v635
      %v693 = vadd.f32 %v469, %v640
      %v694 = vadd.f32 %v470, %v645
      %v695 = vadd.f32 %v471, %v650
      %v696 = vadd.f32 %v472, %v655
      %v697 = vadd.f32 %v473, %v660
      %v698 = vadd.f32 %v474, %v665
      %v699 = vmax.f32 %v667, 0.0
      %v700 = vmax.f32 %v668, 0.0
      %v701 = vmax.f32 %v669, 0.0
      %v702 = vmax.f32 %v670, 0.0
      %v703 = vmax.f32 %v671, 0.0
      %v704 = vmax.f32 %v672, 0.0
      %v705 = vmax.f32 %v673, 0.0
      %v706 = vmax.f32 %v674, 0.0
      %v707 = vmax.f32 %v675, 0.0
      %v708 = vmax.f32 %v676, 0.0
      %v709 = vmax.f32 %v677, 0.0
      %v710 = vmax.f32 %v678, 0.0
      %v711 = vmax.f32 %v679, 0.0
      %v712 = vmax.f32 %v680, 0.0
      %v713 = vmax.f32 %v681, 0.0
      %v714 = vmax.f32 %v682, 0.0
      %v715 = vmax.f32 %v683, 0.0
      %v716 = vmax.f32 %v684, 0.0
      %v717 = vmax.f32 %v685, 0.0
      %v718 = vmax.f32 %v686, 0.0
      %v719 = vmax.f32 %v687, 0.0
      %v720 = vmax.f32 %v688, 0.0
      %v721 = vmax.f32 %v689, 0.0
      %v722 = vmax.f32 %v690, 0.0
      %v723 = vmax.f32 %v691, 0.0
      %v724 = vmax.f32 %v692, 0.0
      %v725 = vmax.f32 %v693, 0.0
      %v726 = vmax.f32 %v694, 0.0
      %v727 = vmax.f32 %v695, 0.0
      %v728 = vmax.f32 %v696, 0.0
      %v729 = vmax.f32 %v697, 0.0
      %v730 = vmax.f32 %v698, 0.0
      %v731 = vld [vmem:[%s3] sm:$0x1f]
      %v732 = vld [vmem:[%s3 + $0x8] sm:$0x1f]
      %v733 = vld [vmem:[%s4] sm:$0x1f]
      %735 = vset.pattern.permute.xlu0 0
      %736 = vperm.xlu0 %735, %v733
      %v737 = vpop.permute.xlu0 %736
      %739 = vmatprep.subr.mxu0 0.0
      %740 = vmatpush1.msra.mxu0 %v699
      %741 = vmatprep.subr.mxu0 0.0
      %742 = vmatpush1.msra.mxu0 %v700
      %743 = vmatprep.subr.mxu0 0.0
      %744 = vmatpush1.msra.mxu0 %v701
      %745 = vmatprep.subr.mxu0 0.0
      %746 = vmatpush1.msra.mxu0 %v702
      %747 = vmatprep.subr.mxu0 0.0
      %748 = vmatpush1.msra.mxu0 %v703
      %749 = vmatprep.subr.mxu0 0.0
      %750 = vmatpush1.msra.mxu0 %v704
      %751 = vmatprep.subr.mxu0 0.0
      %752 = vmatpush1.msra.mxu0 %v705
      %753 = vmatprep.subr.mxu0 0.0
      %754 = vmatpush1.msra.mxu0 %v706
      %755 = vmatprep.subr.mxu0 0.0
      %756 = vmatpush1.msra.mxu0 %v707
      %757 = vmatprep.subr.mxu0 0.0
      %758 = vmatpush1.msra.mxu0 %v708
      %759 = vmatprep.subr.mxu0 0.0
      %760 = vmatpush1.msra.mxu0 %v709
      %761 = vmatprep.subr.mxu0 0.0
      %762 = vmatpush1.msra.mxu0 %v710
      %763 = vmatprep.subr.mxu0 0.0
      %764 = vmatpush1.msra.mxu0 %v711
      %765 = vmatprep.subr.mxu0 0.0
      %766 = vmatpush1.msra.mxu0 %v712
      %767 = vmatprep.subr.mxu0 0.0
      %768 = vmatpush1.msra.mxu0 %v713
      %769 = vmatprep.subr.mxu0 0.0
      %770 = vmatpush1.msra.mxu0 %v714
      %771 = vmatprep.subr.mxu0 0.0
      %772 = vmatpush1.msra.mxu0 %v715
      %773 = vmatprep.subr.mxu0 0.0
      %774 = vmatpush1.msra.mxu0 %v716
      %775 = vmatprep.subr.mxu0 0.0
      %776 = vmatpush1.msra.mxu0 %v717
      %777 = vmatprep.subr.mxu0 0.0
      %778 = vmatpush1.msra.mxu0 %v718
      %779 = vmatprep.subr.mxu0 0.0
      %780 = vmatpush1.msra.mxu0 %v719
      %781 = vmatprep.subr.mxu0 0.0
      %782 = vmatpush1.msra.mxu0 %v720
      %783 = vmatprep.subr.mxu0 0.0
      %784 = vmatpush1.msra.mxu0 %v721
      %785 = vmatprep.subr.mxu0 0.0
      %786 = vmatpush1.msra.mxu0 %v722
      %787 = vmatprep.subr.mxu0 0.0
      %788 = vmatpush1.msra.mxu0 %v723
      %789 = vmatprep.subr.mxu0 0.0
      %790 = vmatpush1.msra.mxu0 %v724
      %791 = vmatprep.subr.mxu0 0.0
      %792 = vmatpush1.msra.mxu0 %v725
      %793 = vmatprep.subr.mxu0 0.0
      %794 = vmatpush1.msra.mxu0 %v726
      %795 = vmatprep.subr.mxu0 0.0
      %796 = vmatpush1.msra.mxu0 %v727
      %797 = vmatprep.subr.mxu0 0.0
      %798 = vmatpush1.msra.mxu0 %v728
      %799 = vmatprep.subr.mxu0 0.0
      %800 = vmatpush1.msra.mxu0 %v729
      %801 = vmatprep.subr.mxu0 0.0
      %802 = vmatpush1.msra.mxu0 %v730
      %803 = vmatprep.mubr.f32.mxu0 %v732
      %804 = vmatmul.mubr.f32.gmra.mrb[0].mxu0 %v731
      %v805 = vpop.f32.mrb[0].mxu0
      %v806 = vadd.f32 %v737, %v805
      %v807 = vpop.f32.mrb[0].mxu0
      %808 = vdwg.mxu0
      %vm809 = vcmask 1044480
      %v810 = vsel %vm809, %v806, 0.0
      %v811 = vrot.slane %v810, 4
      %v812 = vadd.f32 %v810, %v811
      %v813 = vrot.slane %v812, 2
      %v814 = vadd.f32 %v812, %v813
      %v815 = vrot.slane %v814, 1
      %v816 = vadd.f32 %v814, %v815
      %v817 = vmul.f32 %v816, 0.2
      %v818 = vsub.f32 %v806, %v817
      %v819 = vmul.f32 %v818, %v818
      %v820 = vsel %vm809, %v819, 0.0
      %v821 = vrot.slane %v820, 4
      %v822 = vadd.f32 %v820, %v821
      %v823 = vrot.slane %v822, 2
      %v824 = vadd.f32 %v822, %v823
      %v825 = vrot.slane %v824, 1
      %v826 = vadd.f32 %v824, %v825
      %v827 = vmul.f32 %v826, 0.25
      %v828 = vmax.f32 %v827, 0.0
      %v829 = vrsqrt.pop %v828
      %v830 = vmul.f32 %v828, %v829
      %vm831 = vcmp.eq.f32.partialorder %v828, inf
      %v832 = vsel %vm831, %v828, %v830
      %vm833 = vcmp.eq.f32.partialorder %v828, 0.0
      %v834 = vand.u32 %v828, 2147483648
      %v835 = vsel %vm833, %v834, %v832
      %vm836 = vcmask 1040384
      %v837 = vsel %vm836, %v817, %v835
      %838 = vst [vmem:[#allocation6] sm:$0x3] %v837
    $region33: #{tpu_custom_call.1} parent=1 // pred_fallthru
      _
    // Predicated region
    $region34: #{tpu_custom_call.1} parent=1 // pred_check
      _
    $region35: #{tpu_custom_call.1} parent=1 // pred_check_branch
      %840 = sbr.rel (0) target = $region37
    $region36: #{tpu_custom_call.1} parent=1 // pred_region
      %s842 = ssub.s32 32, 32
      %843 = vsyncadd [#allocation5], %s842
      %s845 = sshll.u32 [#allocation6], 4
      %s846 = int_to_ptr.vmem [resolvable:$true] %s845
      %848 = dma.vmem_to_hbm [thread:$0]  %s846, 32, %s5, [#allocation5]
    $region37: #{tpu_custom_call.1} parent=1 // pred_fallthru
      _
    // Predicated region
    $region38: #{tpu_custom_call.1} parent=1 // pred_check
      _
    $region39: #{tpu_custom_call.1} parent=1 // pred_check_branch
      %850 = sbr.rel (0) target = $region41
    $region40: #{tpu_custom_call.1} parent=1 // pred_region
      %851 = dma.done [#allocation5], 32
    $region41: #{tpu_custom_call.1} parent=1 // pred_fallthru
      _
    %852 = vsyncpa [#allocation4], 1
    %853 = vsyncpa [#allocation5], 1

// kernel: tpu_custom_call.1
$region0: #{tpu_custom_call.1}
  #allocation0 [shape = 'u32[]', space=smem, size = 0x4, offset = 0x4, fixed_abs, tag = 'smem constant byte address 0x4 - core index']
  #allocation1 [shape = 'u32[144,128]{1,0:T(1,128)}', space=vmem, size = 0x12000, scoped, tag = 'internal scratch']
  #allocation2 [shape = 'f32[256,128]{1,0:T(8,128)}', space=vmem, size = 0x20000, scoped, tag = 'scratch operand']
  %s0 = inlined_call_operand.hbm [shape: f32[128,128], index: 0, kind: input, shape index: {}]
  %s1 = inlined_call_operand.vmem [shape: f32[256,128], index: 1, kind: input, shape index: {}]
  %s2 = inlined_call_operand.vmem [shape: f32[256,1], index: 2, kind: input, shape index: {}]
  %s3 = inlined_call_operand.vmem [shape: f32[5,256], index: 3, kind: input, shape index: {}]
  %s4 = inlined_call_operand.vmem [shape: f32[5,1], index: 4, kind: input, shape index: {}]
  %s5 = inlined_call_operand.hbm [shape: f32[2,128], index: 5, kind: output, shape index: {}]
  %s6 = sld [smem:[#allocation0]]
  $region42: #{tpu_custom_call.1} parent=0
    _
  %s8 = ssub.s32 1, %s6
  %s9 = scalar_select 0, %s8, %s6
  $region1: #{tpu_custom_call.1} parent=0
    #allocation3 [shape = 'u8[65536]{0}', space=vmem, size = 0x10000, scoped, tag = 'input window, operand 0, single buffered']
    #allocation4 [shape = 's32[1]{0}', space=sflag, size = 0x4, scoped, tag = 'scoped memory for tpu_custom_call.1']
    #allocation5 [shape = 's32[1]{0}', space=sflag, size = 0x4, scoped, tag = 'scoped memory for tpu_custom_call.1']
    #allocation6 [shape = 'u8[1024]{0}', space=vmem, size = 0x400, scoped, tag = 'output window, operand 0, single buffered']
    %10 = vsyncpa [#allocation4], 0
    %11 = vsyncpa [#allocation5], 0
    // Predicated region
    $region2: #{tpu_custom_call.1} parent=1 // pred_check
      _
    $region3: #{tpu_custom_call.1} parent=1 // pred_check_branch
      %13 = sbr.rel (0) target = $region5
    $region4: #{tpu_custom_call.1} parent=1 // pred_region
      %s15 = ssub.s32 2048, 2048
      %16 = vsyncadd [#allocation4], %s15
      %s17 = sshll.u32 [#allocation3], 4
      %s18 = int_to_ptr.vmem [resolvable:$true] %s17
      %23 = dma.hbm_to_vmem [thread:$0]  %s0, 2048, %s18, [#allocation4], 128, 128, 8
    $region5: #{tpu_custom_call.1} parent=1 // pred_fallthru
      _
    // Predicated region
    $region6: #{tpu_custom_call.1} parent=1 // pred_check
      _
    $region7: #{tpu_custom_call.1} parent=1 // pred_check_branch
      %25 = sbr.rel (0) target = $region9
    $region8: #{tpu_custom_call.1} parent=1 // pred_region
      _
    $region9: #{tpu_custom_call.1} parent=1 // pred_fallthru
      _
    // Predicated region
    $region10: #{tpu_custom_call.1} parent=1 // pred_check
      _
    $region11: #{tpu_custom_call.1} parent=1 // pred_check_branch
      %27 = sbr.rel (0) target = $region13
    $region12: #{tpu_custom_call.1} parent=1 // pred_region
      _
    $region13: #{tpu_custom_call.1} parent=1 // pred_fallthru
      _
    // Predicated region
    $region14: #{tpu_custom_call.1} parent=1 // pred_check
      _
    $region15: #{tpu_custom_call.1} parent=1 // pred_check_branch
      %29 = sbr.rel (0) target = $region17
    $region16: #{tpu_custom_call.1} parent=1 // pred_region
      _
    $region17: #{tpu_custom_call.1} parent=1 // pred_fallthru
      _
    // Predicated region
    $region18: #{tpu_custom_call.1} parent=1 // pred_check
      _
    $region19: #{tpu_custom_call.1} parent=1 // pred_check_branch
      %31 = sbr.rel (0) target = $region21
    $region20: #{tpu_custom_call.1} parent=1 // pred_region
      _
    $region21: #{tpu_custom_call.1} parent=1 // pred_fallthru
      _
    // Predicated region
    $region22: #{tpu_custom_call.1} parent=1 // pred_check
      _
    $region23: #{tpu_custom_call.1} parent=1 // pred_check_branch
      %33 = sbr.rel (0) target = $region25
    $region24: #{tpu_custom_call.1} parent=1 // pred_region
      %34 = dma.done [#allocation4], 2048
    $region25: #{tpu_custom_call.1} parent=1 // pred_fallthru
      _
    %p35 = scmp.eq.s32.totalorder 0, 0
    // Predicated region
    $region26: #{tpu_custom_call.1} parent=1 // pred_check
      %p36 = pneg %p35
    $region27: #{tpu_custom_call.1} parent=1 // pred_check_branch
      %38 = sbr.rel (%p36) target = $region29
    $region28: #{tpu_custom_call.1} parent=1 // pred_region
      %39 = vst [vmem:[#allocation2] sm:$0xff] 0.0
      %40 = vst [vmem:[#allocation2 + $0x8] sm:$0xff] 0.0
      %41 = vst [vmem:[#allocation2 + $0x10] sm:$0xff] 0.0
      %42 = vst [vmem:[#allocation2 + $0x18] sm:$0xff] 0.0
      %43 = vst [vmem:[#allocation2 + $0x20] sm:$0xff] 0.0
      %44 = vst [vmem:[#allocation2 + $0x28] sm:$0xff] 0.0
      %45 = vst [vmem:[#allocation2 + $0x30] sm:$0xff] 0.0
      %46 = vst [vmem:[#allocation2 + $0x38] sm:$0xff] 0.0
      %47 = vst [vmem:[#allocation2 + $0x40] sm:$0xff] 0.0
      %48 = vst [vmem:[#allocation2 + $0x48] sm:$0xff] 0.0
      %49 = vst [vmem:[#allocation2 + $0x50] sm:$0xff] 0.0
      %50 = vst [vmem:[#allocation2 + $0x58] sm:$0xff] 0.0
      %51 = vst [vmem:[#allocation2 + $0x60] sm:$0xff] 0.0
      %52 = vst [vmem:[#allocation2 + $0x68] sm:$0xff] 0.0
      %53 = vst [vmem:[#allocation2 + $0x70] sm:$0xff] 0.0
      %54 = vst [vmem:[#allocation2 + $0x78] sm:$0xff] 0.0
      %55 = vst [vmem:[#allocation2 + $0x80] sm:$0xff] 0.0
      %56 = vst [vmem:[#allocation2 + $0x88] sm:$0xff] 0.0
      %57 = vst [vmem:[#allocation2 + $0x90] sm:$0xff] 0.0
      %58 = vst [vmem:[#allocation2 + $0x98] sm:$0xff] 0.0
      %59 = vst [vmem:[#allocation2 + $0xa0] sm:$0xff] 0.0
      %60 = vst [vmem:[#allocation2 + $0xa8] sm:$0xff] 0.0
      %61 = vst [vmem:[#allocation2 + $0xb0] sm:$0xff] 0.0
      %62 = vst [vmem:[#allocation2 + $0xb8] sm:$0xff] 0.0
      %63 = vst [vmem:[#allocation2 + $0xc0] sm:$0xff] 0.0
      %64 = vst [vmem:[#allocation2 + $0xc8] sm:$0xff] 0.0
      %65 = vst [vmem:[#allocation2 + $0xd0] sm:$0xff] 0.0
      %66 = vst [vmem:[#allocation2 + $0xd8] sm:$0xff] 0.0
      %67 = vst [vmem:[#allocation2 + $0xe0] sm:$0xff] 0.0
      %68 = vst [vmem:[#allocation2 + $0xe8] sm:$0xff] 0.0
      %69 = vst [vmem:[#allocation2 + $0xf0] sm:$0xff] 0.0
      %70 = vst [vmem:[#allocation2 + $0xf8] sm:$0xff] 0.0
    $region29: #{tpu_custom_call.1} parent=1 // pred_fallthru
      _
    %v71 = vld [vmem:[#allocation2] sm:$0xff]
    %v72 = vld [vmem:[#allocation2 + $0x8] sm:$0xff]
    %v73 = vld [vmem:[#allocation2 + $0x10] sm:$0xff]
    %v74 = vld [vmem:[#allocation2 + $0x18] sm:$0xff]
    %v75 = vld [vmem:[#allocation2 + $0x20] sm:$0xff]
    %v76 = vld [vmem:[#allocation2 + $0x28] sm:$0xff]
    %v77 = vld [vmem:[#allocation2 + $0x30] sm:$0xff]
    %v78 = vld [vmem:[#allocation2 + $0x38] sm:$0xff]
    %v79 = vld [vmem:[#allocation2 + $0x40] sm:$0xff]
    %v80 = vld [vmem:[#allocation2 + $0x48] sm:$0xff]
    %v81 = vld [vmem:[#allocation2 + $0x50] sm:$0xff]
    %v82 = vld [vmem:[#allocation2 + $0x58] sm:$0xff]
    %v83 = vld [vmem:[#allocation2 + $0x60] sm:$0xff]
    %v84 = vld [vmem:[#allocation2 + $0x68] sm:$0xff]
    %v85 = vld [vmem:[#allocation2 + $0x70] sm:$0xff]
    %v86 = vld [vmem:[#allocation2 + $0x78] sm:$0xff]
    %v87 = vld [vmem:[#allocation2 + $0x80] sm:$0xff]
    %v88 = vld [vmem:[#allocation2 + $0x88] sm:$0xff]
    %v89 = vld [vmem:[#allocation2 + $0x90] sm:$0xff]
    %v90 = vld [vmem:[#allocation2 + $0x98] sm:$0xff]
    %v91 = vld [vmem:[#allocation2 + $0xa0] sm:$0xff]
    %v92 = vld [vmem:[#allocation2 + $0xa8] sm:$0xff]
    %v93 = vld [vmem:[#allocation2 + $0xb0] sm:$0xff]
    %v94 = vld [vmem:[#allocation2 + $0xb8] sm:$0xff]
    %v95 = vld [vmem:[#allocation2 + $0xc0] sm:$0xff]
    %v96 = vld [vmem:[#allocation2 + $0xc8] sm:$0xff]
    %v97 = vld [vmem:[#allocation2 + $0xd0] sm:$0xff]
    %v98 = vld [vmem:[#allocation2 + $0xd8] sm:$0xff]
    %v99 = vld [vmem:[#allocation2 + $0xe0] sm:$0xff]
    %v100 = vld [vmem:[#allocation2 + $0xe8] sm:$0xff]
    %v101 = vld [vmem:[#allocation2 + $0xf0] sm:$0xff]
    %v102 = vld [vmem:[#allocation2 + $0xf8] sm:$0xff]
    %v103 = vld [vmem:[%s1] sm:$0xff]
    %v104 = vld [vmem:[%s1 + $0x8] sm:$0xff]
    %v105 = vld [vmem:[%s1 + $0x10] sm:$0xff]
    %v106 = vld [vmem:[%s1 + $0x18] sm:$0xff]
    %v107 = vld [vmem:[%s1 + $0x20] sm:$0xff]
    %v108 = vld [vmem:[%s1 + $0x28] sm:$0xff]
    %v109 = vld [vmem:[%s1 + $0x30] sm:$0xff]
    %v110 = vld [vmem:[%s1 + $0x38] sm:$0xff]
    %v111 = vld [vmem:[%s1 + $0x40] sm:$0xff]
    %v112 = vld [vmem:[%s1 + $0x48] sm:$0xff]
    %v113 = vld [vmem:[%s1 + $0x50] sm:$0xff]
    %v114 = vld [vmem:[%s1 + $0x58] sm:$0xff]
    %v115 = vld [vmem:[%s1 + $0x60] sm:$0xff]
    %v116 = vld [vmem:[%s1 + $0x68] sm:$0xff]
    %v117 = vld [vmem:[%s1 + $0x70] sm:$0xff]
    %v118 = vld [vmem:[%s1 + $0x78] sm:$0xff]
    %v119 = vld [vmem:[%s1 + $0x80] sm:$0xff]
    %v120 = vld [vmem:[%s1 + $0x88] sm:$0xff]
    %v121 = vld [vmem:[%s1 + $0x90] sm:$0xff]
    %v122 = vld [vmem:[%s1 + $0x98] sm:$0xff]
    %v123 = vld [vmem:[%s1 + $0xa0] sm:$0xff]
    %v124 = vld [vmem:[%s1 + $0xa8] sm:$0xff]
    %v125 = vld [vmem:[%s1 + $0xb0] sm:$0xff]
    %v126 = vld [vmem:[%s1 + $0xb8] sm:$0xff]
    %v127 = vld [vmem:[%s1 + $0xc0] sm:$0xff]
    %v128 = vld [vmem:[%s1 + $0xc8] sm:$0xff]
    %v129 = vld [vmem:[%s1 + $0xd0] sm:$0xff]
    %v130 = vld [vmem:[%s1 + $0xd8] sm:$0xff]
    %v131 = vld [vmem:[%s1 + $0xe0] sm:$0xff]
    %v132 = vld [vmem:[%s1 + $0xe8] sm:$0xff]
    %v133 = vld [vmem:[%s1 + $0xf0] sm:$0xff]
    %v134 = vld [vmem:[%s1 + $0xf8] sm:$0xff]
    %v135 = vld [vmem:[#allocation3] sm:$0xff]
    %v136 = vld [vmem:[#allocation3 + $0x8] sm:$0xff]
    %v137 = vld [vmem:[#allocation3 + $0x10] sm:$0xff]
    %v138 = vld [vmem:[#allocation3 + $0x18] sm:$0xff]
    %v139 = vld [vmem:[#allocation3 + $0x20] sm:$0xff]
    %v140 = vld [vmem:[#allocation3 + $0x28] sm:$0xff]
    %v141 = vld [vmem:[#allocation3 + $0x30] sm:$0xff]
    %v142 = vld [vmem:[#allocation3 + $0x38] sm:$0xff]
    %v143 = vld [vmem:[#allocation3 + $0x40] sm:$0xff]
    %v144 = vld [vmem:[#allocation3 + $0x48] sm:$0xff]
    %v145 = vld [vmem:[#allocation3 + $0x50] sm:$0xff]
    %v146 = vld [vmem:[#allocation3 + $0x58] sm:$0xff]
    %v147 = vld [vmem:[#allocation3 + $0x60] sm:$0xff]
    %v148 = vld [vmem:[#allocation3 + $0x68] sm:$0xff]
    %v149 = vld [vmem:[#allocation3 + $0x70] sm:$0xff]
    %v150 = vld [vmem:[#allocation3 + $0x78] sm:$0xff]
    %151 = vmatprep.subr.mxu0 0.0
    %152 = vmatpush1.msra.mxu0 %v135
    %153 = vmatprep.subr.mxu0 0.0
    %154 = vmatpush1.msra.mxu0 %v136
    %155 = vmatprep.subr.mxu0 0.0
    %156 = vmatpush1.msra.mxu0 %v137
    %157 = vmatprep.subr.mxu0 0.0
    %158 = vmatpush1.msra.mxu0 %v138
    %159 = vmatprep.subr.mxu0 0.0
    %160 = vmatpush1.msra.mxu0 %v139
    %161 = vmatprep.subr.mxu0 0.0
    %162 = vmatpush1.msra.mxu0 %v140
    %163 = vmatprep.subr.mxu0 0.0
    %164 = vmatpush1.msra.mxu0 %v141
    %165 = vmatprep.subr.mxu0 0.0
    %166 = vmatpush1.msra.mxu0 %v142
    %167 = vmatprep.subr.mxu0 0.0
    %168 = vmatpush1.msra.mxu0 %v143
    %169 = vmatprep.subr.mxu0 0.0
    %170 = vmatpush1.msra.mxu0 %v144
    %171 = vmatprep.subr.mxu0 0.0
    %172 = vmatpush1.msra.mxu0 %v145
    %173 = vmatprep.subr.mxu0 0.0
    %174 = vmatpush1.msra.mxu0 %v146
    %175 = vmatprep.subr.mxu0 0.0
    %176 = vmatpush1.msra.mxu0 %v147
    %177 = vmatprep.subr.mxu0 0.0
    %178 = vmatpush1.msra.mxu0 %v148
    %179 = vmatprep.subr.mxu0 0.0
    %180 = vmatpush1.msra.mxu0 %v149
    %181 = vmatprep.subr.mxu0 0.0
    %182 = vmatpush1.msra.mxu0 %v150
    %183 = vmatprep.subr.mxu0 0.0
    %184 = vmatpush1.msra.mxu0 0.0
    %185 = vmatprep.subr.mxu0 0.0
    %186 = vmatpush1.msra.mxu0 0.0
    %187 = vmatprep.subr.mxu0 0.0
    %188 = vmatpush1.msra.mxu0 0.0
    %189 = vmatprep.subr.mxu0 0.0
    %190 = vmatpush1.msra.mxu0 0.0
    %191 = vmatprep.subr.mxu0 0.0
    %192 = vmatpush1.msra.mxu0 0.0
    %193 = vmatprep.subr.mxu0 0.0
    %194 = vmatpush1.msra.mxu0 0.0
    %195 = vmatprep.subr.mxu0 0.0
    %196 = vmatpush1.msra.mxu0 0.0
    %197 = vmatprep.subr.mxu0 0.0
    %198 = vmatpush1.msra.mxu0 0.0
    %199 = vmatprep.subr.mxu0 0.0
    %200 = vmatpush1.msra.mxu0 0.0
    %201 = vmatprep.subr.mxu0 0.0
    %202 = vmatpush1.msra.mxu0 0.0
    %203 = vmatprep.subr.mxu0 0.0
    %204 = vmatpush1.msra.mxu0 0.0
    %205 = vmatprep.subr.mxu0 0.0
    %206 = vmatpush1.msra.mxu0 0.0
    %207 = vmatprep.subr.mxu0 0.0
    %208 = vmatpush1.msra.mxu0 0.0
    %209 = vmatprep.subr.mxu0 0.0
    %210 = vmatpush1.msra.mxu0 0.0
    %211 = vmatprep.subr.mxu0 0.0
    %212 = vmatpush1.msra.mxu0 0.0
    %213 = vmatprep.subr.mxu0 0.0
    %214 = vmatpush1.msra.mxu0 0.0
    %215 = vmatprep.mubr.f32.mxu0 0.0
    %216 = vmatmul.mubr.f32.gmra.mrb[0].mxu0 %v103
    %v217 = vpop.f32.mrb[0].mxu0
    %v218 = vadd.f32 0.0, %v217
    %v219 = vpop.f32.mrb[0].mxu0
    %220 = vmatprep.mubr.f32.mxu0 0.0
    %221 = vmatmul.mubr.f32.gmra.mrb[0].mxu0 %v104
    %v222 = vpop.f32.mrb[0].mxu0
    %v223 = vadd.f32 0.0, %v222
    %v224 = vpop.f32.mrb[0].mxu0
    %225 = vmatprep.mubr.f32.mxu0 0.0
    %226 = vmatmul.mubr.f32.gmra.mrb[0].mxu0 %v105
    %v227 = vpop.f32.mrb[0].mxu0
    %v228 = vadd.f32 0.0, %v227
    %v229 = vpop.f32.mrb[0].mxu0
    %230 = vmatprep.mubr.f32.mxu0 0.0
    %231 = vmatmul.mubr.f32.gmra.mrb[0].mxu0 %v106
    %v232 = vpop.f32.mrb[0].mxu0
    %v233 = vadd.f32 0.0, %v232
    %v234 = vpop.f32.mrb[0].mxu0
    %235 = vmatprep.mubr.f32.mxu0 0.0
    %236 = vmatmul.mubr.f32.gmra.mrb[0].mxu0 %v107
    %v237 = vpop.f32.mrb[0].mxu0
    %v238 = vadd.f32 0.0, %v237
    %v239 = vpop.f32.mrb[0].mxu0
    %240 = vmatprep.mubr.f32.mxu0 0.0
    %241 = vmatmul.mubr.f32.gmra.mrb[0].mxu0 %v108
    %v242 = vpop.f32.mrb[0].mxu0
    %v243 = vadd.f32 0.0, %v242
    %v244 = vpop.f32.mrb[0].mxu0
    %245 = vmatprep.mubr.f32.mxu0 0.0
    %246 = vmatmul.mubr.f32.gmra.mrb[0].mxu0 %v109
    %v247 = vpop.f32.mrb[0].mxu0
    %v248 = vadd.f32 0.0, %v247
    %v249 = vpop.f32.mrb[0].mxu0
    %250 = vmatprep.mubr.f32.mxu0 0.0
    %251 = vmatmul.mubr.f32.gmra.mrb[0].mxu0 %v110
    %v252 = vpop.f32.mrb[0].mxu0
    %v253 = vadd.f32 0.0, %v252
    %v254 = vpop.f32.mrb[0].mxu0
    %255 = vmatprep.mubr.f32.mxu0 0.0
    %256 = vmatmul.mubr.f32.gmra.mrb[0].mxu0 %v111
    %v257 = vpop.f32.mrb[0].mxu0
    %v258 = vadd.f32 0.0, %v257
    %v259 = vpop.f32.mrb[0].mxu0
    %260 = vmatprep.mubr.f32.mxu0 0.0
    %261 = vmatmul.mubr.f32.gmra.mrb[0].mxu0 %v112
    %v262 = vpop.f32.mrb[0].mxu0
    %v263 = vadd.f32 0.0, %v262
    %v264 = vpop.f32.mrb[0].mxu0
    %265 = vmatprep.mubr.f32.mxu0 0.0
    %266 = vmatmul.mubr.f32.gmra.mrb[0].mxu0 %v113
    %v267 = vpop.f32.mrb[0].mxu0
    %v268 = vadd.f32 0.0, %v267
    %v269 = vpop.f32.mrb[0].mxu0
    %270 = vmatprep.mubr.f32.mxu0 0.0
    %271 = vmatmul.mubr.f32.gmra.mrb[0].mxu0 %v114
    %v272 = vpop.f32.mrb[0].mxu0
    %v273 = vadd.f32 0.0, %v272
    %v274 = vpop.f32.mrb[0].mxu0
    %275 = vmatprep.mubr.f32.mxu0 0.0
    %276 = vmatmul.mubr.f32.gmra.mrb[0].mxu0 %v115
    %v277 = vpop.f32.mrb[0].mxu0
    %v278 = vadd.f32 0.0, %v277
    %v279 = vpop.f32.mrb[0].mxu0
    %280 = vmatprep.mubr.f32.mxu0 0.0
    %281 = vmatmul.mubr.f32.gmra.mrb[0].mxu0 %v116
    %v282 = vpop.f32.mrb[0].mxu0
    %v283 = vadd.f32 0.0, %v282
    %v284 = vpop.f32.mrb[0].mxu0
    %285 = vmatprep.mubr.f32.mxu0 0.0
    %286 = vmatmul.mubr.f32.gmra.mrb[0].mxu0 %v117
    %v287 = vpop.f32.mrb[0].mxu0
    %v288 = vadd.f32 0.0, %v287
    %v289 = vpop.f32.mrb[0].mxu0
    %290 = vmatprep.mubr.f32.mxu0 0.0
    %291 = vmatmul.mubr.f32.gmra.mrb[0].mxu0 %v118
    %v292 = vpop.f32.mrb[0].mxu0
    %v293 = vadd.f32 0.0, %v292
    %v294 = vpop.f32.mrb[0].mxu0
    %295 = vmatprep.mubr.f32.mxu0 0.0
    %296 = vmatmul.mubr.f32.gmra.mrb[0].mxu0 %v119
    %v297 = vpop.f32.mrb[0].mxu0
    %v298 = vadd.f32 0.0, %v297
    %v299 = vpop.f32.mrb[0].mxu0
    %300 = vmatprep.mubr.f32.mxu0 0.0
    %301 = vmatmul.mubr.f32.gmra.mrb[0].mxu0 %v120
    %v302 = vpop.f32.mrb[0].mxu0
    %v303 = vadd.f32 0.0, %v302
    %v304 = vpop.f32.mrb[0].mxu0
    %305 = vmatprep.mubr.f32.mxu0 0.0
    %306 = vmatmul.mubr.f32.gmra.mrb[0].mxu0 %v121
    %v307 = vpop.f32.mrb[0].mxu0
    %v308 = vadd.f32 0.0, %v307
    %v309 = vpop.f32.mrb[0].mxu0
    %310 = vmatprep.mubr.f32.mxu0 0.0
    %311 = vmatmul.mubr.f32.gmra.mrb[0].mxu0 %v122
    %v312 = vpop.f32.mrb[0].mxu0
    %v313 = vadd.f32 0.0, %v312
    %v314 = vpop.f32.mrb[0].mxu0
    %315 = vmatprep.mubr.f32.mxu0 0.0
    %316 = vmatmul.mubr.f32.gmra.mrb[0].mxu0 %v123
    %v317 = vpop.f32.mrb[0].mxu0
    %v318 = vadd.f32 0.0, %v317
    %v319 = vpop.f32.mrb[0].mxu0
    %320 = vmatprep.mubr.f32.mxu0 0.0
    %321 = vmatmul.mubr.f32.gmra.mrb[0].mxu0 %v124
    %v322 = vpop.f32.mrb[0].mxu0
    %v323 = vadd.f32 0.0, %v322
    %v324 = vpop.f32.mrb[0].mxu0
    %325 = vmatprep.mubr.f32.mxu0 0.0
    %326 = vmatmul.mubr.f32.gmra.mrb[0].mxu0 %v125
    %v327 = vpop.f32.mrb[0].mxu0
    %v328 = vadd.f32 0.0, %v327
    %v329 = vpop.f32.mrb[0].mxu0
    %330 = vmatprep.mubr.f32.mxu0 0.0
    %331 = vmatmul.mubr.f32.gmra.mrb[0].mxu0 %v126
    %v332 = vpop.f32.mrb[0].mxu0
    %v333 = vadd.f32 0.0, %v332
    %v334 = vpop.f32.mrb[0].mxu0
    %335 = vmatprep.mubr.f32.mxu0 0.0
    %336 = vmatmul.mubr.f32.gmra.mrb[0].mxu0 %v127
    %v337 = vpop.f32.mrb[0].mxu0
    %v338 = vadd.f32 0.0, %v337
    %v339 = vpop.f32.mrb[0].mxu0
    %340 = vmatprep.mubr.f32.mxu0 0.0
    %341 = vmatmul.mubr.f32.gmra.mrb[0].mxu0 %v128
    %v342 = vpop.f32.mrb[0].mxu0
    %v343 = vadd.f32 0.0, %v342
    %v344 = vpop.f32.mrb[0].mxu0
    %345 = vmatprep.mubr.f32.mxu0 0.0
    %346 = vmatmul.mubr.f32.gmra.mrb[0].mxu0 %v129
    %v347 = vpop.f32.mrb[0].mxu0
    %v348 = vadd.f32 0.0, %v347
    %v349 = vpop.f32.mrb[0].mxu0
    %350 = vmatprep.mubr.f32.mxu0 0.0
    %351 = vmatmul.mubr.f32.gmra.mrb[0].mxu0 %v130
    %v352 = vpop.f32.mrb[0].mxu0
    %v353 = vadd.f32 0.0, %v352
    %v354 = vpop.f32.mrb[0].mxu0
    %355 = vmatprep.mubr.f32.mxu0 0.0
    %356 = vmatmul.mubr.f32.gmra.mrb[0].mxu0 %v131
    %v357 = vpop.f32.mrb[0].mxu0
    %v358 = vadd.f32 0.0, %v357
    %v359 = vpop.f32.mrb[0].mxu0
    %360 = vmatprep.mubr.f32.mxu0 0.0
    %361 = vmatmul.mubr.f32.gmra.mrb[0].mxu0 %v132
    %v362 = vpop.f32.mrb[0].mxu0
    %v363 = vadd.f32 0.0, %v362
    %v364 = vpop.f32.mrb[0].mxu0
    %365 = vmatprep.mubr.f32.mxu0 0.0
    %366 = vmatmul.mubr.f32.gmra.mrb[0].mxu0 %v133
    %v367 = vpop.f32.mrb[0].mxu0
    %v368 = vadd.f32 0.0, %v367
    %v369 = vpop.f32.mrb[0].mxu0
    %370 = vmatprep.mubr.f32.mxu0 0.0
    %371 = vmatmul.mubr.f32.gmra.mrb[0].mxu0 %v134
    %v372 = vpop.f32.mrb[0].mxu0
    %v373 = vadd.f32 0.0, %v372
    %v374 = vpop.f32.mrb[0].mxu0
    %375 = vdwg.mxu0
    %v376 = vadd.f32 %v71, %v218
    %v377 = vadd.f32 %v72, %v223
    %v378 = vadd.f32 %v73, %v228
    %v379 = vadd.f32 %v74, %v233
    %v380 = vadd.f32 %v75, %v238
    %v381 = vadd.f32 %v76, %v243
    %v382 = vadd.f32 %v77, %v248
    %v383 = vadd.f32 %v78, %v253
    %v384 = vadd.f32 %v79, %v258
    %v385 = vadd.f32 %v80, %v263
    %v386 = vadd.f32 %v81, %v268
    %v387 = vadd.f32 %v82, %v273
    %v388 = vadd.f32 %v83, %v278
    %v389 = vadd.f32 %v84, %v283
    %v390 = vadd.f32 %v85, %v288
    %v391 = vadd.f32 %v86, %v293
    %v392 = vadd.f32 %v87, %v298
    %v393 = vadd.f32 %v88, %v303
    %v394 = vadd.f32 %v89, %v308
    %v395 = vadd.f32 %v90, %v313
    %v396 = vadd.f32 %v91, %v318
    %v397 = vadd.f32 %v92, %v323
    %v398 = vadd.f32 %v93, %v328
    %v399 = vadd.f32 %v94, %v333
    %v400 = vadd.f32 %v95, %v338
    %v401 = vadd.f32 %v96, %v343
    %v402 = vadd.f32 %v97, %v348
    %v403 = vadd.f32 %v98, %v353
    %v404 = vadd.f32 %v99, %v358
    %v405 = vadd.f32 %v100, %v363
    %v406 = vadd.f32 %v101, %v368
    %v407 = vadd.f32 %v102, %v373
    %408 = vst [vmem:[#allocation2] sm:$0xff] %v376
    %409 = vst [vmem:[#allocation2 + $0x8] sm:$0xff] %v377
    %410 = vst [vmem:[#allocation2 + $0x10] sm:$0xff] %v378
    %411 = vst [vmem:[#allocation2 + $0x18] sm:$0xff] %v379
    %412 = vst [vmem:[#allocation2 + $0x20] sm:$0xff] %v380
    %413 = vst [vmem:[#allocation2 + $0x28] sm:$0xff] %v381
    %414 = vst [vmem:[#allocation2 + $0x30] sm:$0xff] %v382
    %415 = vst [vmem:[#allocation2 + $0x38] sm:$0xff] %v383
    %416 = vst [vmem:[#allocation2 + $0x40] sm:$0xff] %v384
    %417 = vst [vmem:[#allocation2 + $0x48] sm:$0xff] %v385
    %418 = vst [vmem:[#allocation2 + $0x50] sm:$0xff] %v386
    %419 = vst [vmem:[#allocation2 + $0x58] sm:$0xff] %v387
    %420 = vst [vmem:[#allocation2 + $0x60] sm:$0xff] %v388
    %421 = vst [vmem:[#allocation2 + $0x68] sm:$0xff] %v389
    %422 = vst [vmem:[#allocation2 + $0x70] sm:$0xff] %v390
    %423 = vst [vmem:[#allocation2 + $0x78] sm:$0xff] %v391
    %424 = vst [vmem:[#allocation2 + $0x80] sm:$0xff] %v392
    %425 = vst [vmem:[#allocation2 + $0x88] sm:$0xff] %v393
    %426 = vst [vmem:[#allocation2 + $0x90] sm:$0xff] %v394
    %427 = vst [vmem:[#allocation2 + $0x98] sm:$0xff] %v395
    %428 = vst [vmem:[#allocation2 + $0xa0] sm:$0xff] %v396
    %429 = vst [vmem:[#allocation2 + $0xa8] sm:$0xff] %v397
    %430 = vst [vmem:[#allocation2 + $0xb0] sm:$0xff] %v398
    %431 = vst [vmem:[#allocation2 + $0xb8] sm:$0xff] %v399
    %432 = vst [vmem:[#allocation2 + $0xc0] sm:$0xff] %v400
    %433 = vst [vmem:[#allocation2 + $0xc8] sm:$0xff] %v401
    %434 = vst [vmem:[#allocation2 + $0xd0] sm:$0xff] %v402
    %435 = vst [vmem:[#allocation2 + $0xd8] sm:$0xff] %v403
    %436 = vst [vmem:[#allocation2 + $0xe0] sm:$0xff] %v404
    %437 = vst [vmem:[#allocation2 + $0xe8] sm:$0xff] %v405
    %438 = vst [vmem:[#allocation2 + $0xf0] sm:$0xff] %v406
    %439 = vst [vmem:[#allocation2 + $0xf8] sm:$0xff] %v407
    // Predicated region
    $region30: #{tpu_custom_call.1} parent=1 // pred_check
      %p440 = pneg %p35
    $region31: #{tpu_custom_call.1} parent=1 // pred_check_branch
      %442 = sbr.rel (%p440) target = $region33
    $region32: #{tpu_custom_call.1} parent=1 // pred_region
      %v443 = vld [vmem:[#allocation2] sm:$0xff]
      %v444 = vld [vmem:[#allocation2 + $0x8] sm:$0xff]
      %v445 = vld [vmem:[#allocation2 + $0x10] sm:$0xff]
      %v446 = vld [vmem:[#allocation2 + $0x18] sm:$0xff]
      %v447 = vld [vmem:[#allocation2 + $0x20] sm:$0xff]
      %v448 = vld [vmem:[#allocation2 + $0x28] sm:$0xff]
      %v449 = vld [vmem:[#allocation2 + $0x30] sm:$0xff]
      %v450 = vld [vmem:[#allocation2 + $0x38] sm:$0xff]
      %v451 = vld [vmem:[#allocation2 + $0x40] sm:$0xff]
      %v452 = vld [vmem:[#allocation2 + $0x48] sm:$0xff]
      %v453 = vld [vmem:[#allocation2 + $0x50] sm:$0xff]
      %v454 = vld [vmem:[#allocation2 + $0x58] sm:$0xff]
      %v455 = vld [vmem:[#allocation2 + $0x60] sm:$0xff]
      %v456 = vld [vmem:[#allocation2 + $0x68] sm:$0xff]
      %v457 = vld [vmem:[#allocation2 + $0x70] sm:$0xff]
      %v458 = vld [vmem:[#allocation2 + $0x78] sm:$0xff]
      %v459 = vld [vmem:[#allocation2 + $0x80] sm:$0xff]
      %v460 = vld [vmem:[#allocation2 + $0x88] sm:$0xff]
      %v461 = vld [vmem:[#allocation2 + $0x90] sm:$0xff]
      %v462 = vld [vmem:[#allocation2 + $0x98] sm:$0xff]
      %v463 = vld [vmem:[#allocation2 + $0xa0] sm:$0xff]
      %v464 = vld [vmem:[#allocation2 + $0xa8] sm:$0xff]
      %v465 = vld [vmem:[#allocation2 + $0xb0] sm:$0xff]
      %v466 = vld [vmem:[#allocation2 + $0xb8] sm:$0xff]
      %v467 = vld [vmem:[#allocation2 + $0xc0] sm:$0xff]
      %v468 = vld [vmem:[#allocation2 + $0xc8] sm:$0xff]
      %v469 = vld [vmem:[#allocation2 + $0xd0] sm:$0xff]
      %v470 = vld [vmem:[#allocation2 + $0xd8] sm:$0xff]
      %v471 = vld [vmem:[#allocation2 + $0xe0] sm:$0xff]
      %v472 = vld [vmem:[#allocation2 + $0xe8] sm:$0xff]
      %v473 = vld [vmem:[#allocation2 + $0xf0] sm:$0xff]
      %v474 = vld [vmem:[#allocation2 + $0xf8] sm:$0xff]
      %v475 = vld [vmem:[%s2] sm:$0xff]
      %v476 = vld [vmem:[%s2 + $0x8] sm:$0xff]
      %v477 = vld [vmem:[%s2 + $0x10] sm:$0xff]
      %v478 = vld [vmem:[%s2 + $0x18] sm:$0xff]
      %v479 = vld [vmem:[%s2 + $0x20] sm:$0xff]
      %v480 = vld [vmem:[%s2 + $0x28] sm:$0xff]
      %v481 = vld [vmem:[%s2 + $0x30] sm:$0xff]
      %v482 = vld [vmem:[%s2 + $0x38] sm:$0xff]
      %v483 = vld [vmem:[%s2 + $0x40] sm:$0xff]
      %v484 = vld [vmem:[%s2 + $0x48] sm:$0xff]
      %v485 = vld [vmem:[%s2 + $0x50] sm:$0xff]
      %v486 = vld [vmem:[%s2 + $0x58] sm:$0xff]
      %v487 = vld [vmem:[%s2 + $0x60] sm:$0xff]
      %v488 = vld [vmem:[%s2 + $0x68] sm:$0xff]
      %v489 = vld [vmem:[%s2 + $0x70] sm:$0xff]
      %v490 = vld [vmem:[%s2 + $0x78] sm:$0xff]
      %v491 = vld [vmem:[%s2 + $0x80] sm:$0xff]
      %v492 = vld [vmem:[%s2 + $0x88] sm:$0xff]
      %v493 = vld [vmem:[%s2 + $0x90] sm:$0xff]
      %v494 = vld [vmem:[%s2 + $0x98] sm:$0xff]
      %v495 = vld [vmem:[%s2 + $0xa0] sm:$0xff]
      %v496 = vld [vmem:[%s2 + $0xa8] sm:$0xff]
      %v497 = vld [vmem:[%s2 + $0xb0] sm:$0xff]
      %v498 = vld [vmem:[%s2 + $0xb8] sm:$0xff]
      %v499 = vld [vmem:[%s2 + $0xc0] sm:$0xff]
      %v500 = vld [vmem:[%s2 + $0xc8] sm:$0xff]
      %v501 = vld [vmem:[%s2 + $0xd0] sm:$0xff]
      %v502 = vld [vmem:[%s2 + $0xd8] sm:$0xff]
      %v503 = vld [vmem:[%s2 + $0xe0] sm:$0xff]
      %v504 = vld [vmem:[%s2 + $0xe8] sm:$0xff]
      %v505 = vld [vmem:[%s2 + $0xf0] sm:$0xff]
      %v506 = vld [vmem:[%s2 + $0xf8] sm:$0xff]
      %508 = vset.pattern.permute.xlu0 0
      %509 = vperm.xlu0 %508, %v475
      %v510 = vpop.permute.xlu0 %509
      %513 = vset.pattern.permute.xlu0 0
      %514 = vperm.xlu0 %513, %v476
      %v515 = vpop.permute.xlu0 %514
      %518 = vset.pattern.permute.xlu0 0
      %519 = vperm.xlu0 %518, %v477
      %v520 = vpop.permute.xlu0 %519
      %523 = vset.pattern.permute.xlu0 0
      %524 = vperm.xlu0 %523, %v478
      %v525 = vpop.permute.xlu0 %524
      %528 = vset.pattern.permute.xlu0 0
      %529 = vperm.xlu0 %528, %v479
      %v530 = vpop.permute.xlu0 %529
      %533 = vset.pattern.permute.xlu0 0
      %534 = vperm.xlu0 %533, %v480
      %v535 = vpop.permute.xlu0 %534
      %538 = vset.pattern.permute.xlu0 0
      %539 = vperm.xlu0 %538, %v481
      %v540 = vpop.permute.xlu0 %539
      %543 = vset.pattern.permute.xlu0 0
      %544 = vperm.xlu0 %543, %v482
      %v545 = vpop.permute.xlu0 %544
      %548 = vset.pattern.permute.xlu0 0
      %549 = vperm.xlu0 %548, %v483
      %v550 = vpop.permute.xlu0 %549
      %553 = vset.pattern.permute.xlu0 0
      %554 = vperm.xlu0 %553, %v484
      %v555 = vpop.permute.xlu0 %554
      %558 = vset.pattern.permute.xlu0 0
      %559 = vperm.xlu0 %558, %v485
      %v560 = vpop.permute.xlu0 %559
      %563 = vset.pattern.permute.xlu0 0
      %564 = vperm.xlu0 %563, %v486
      %v565 = vpop.permute.xlu0 %564
      %568 = vset.pattern.permute.xlu0 0
      %569 = vperm.xlu0 %568, %v487
      %v570 = vpop.permute.xlu0 %569
      %573 = vset.pattern.permute.xlu0 0
      %574 = vperm.xlu0 %573, %v488
      %v575 = vpop.permute.xlu0 %574
      %578 = vset.pattern.permute.xlu0 0
      %579 = vperm.xlu0 %578, %v489
      %v580 = vpop.permute.xlu0 %579
      %583 = vset.pattern.permute.xlu0 0
      %584 = vperm.xlu0 %583, %v490
      %v585 = vpop.permute.xlu0 %584
      %588 = vset.pattern.permute.xlu0 0
      %589 = vperm.xlu0 %588, %v491
      %v590 = vpop.permute.xlu0 %589
      %593 = vset.pattern.permute.xlu0 0
      %594 = vperm.xlu0 %593, %v492
      %v595 = vpop.permute.xlu0 %594
      %598 = vset.pattern.permute.xlu0 0
      %599 = vperm.xlu0 %598, %v493
      %v600 = vpop.permute.xlu0 %599
      %603 = vset.pattern.permute.xlu0 0
      %604 = vperm.xlu0 %603, %v494
      %v605 = vpop.permute.xlu0 %604
      %608 = vset.pattern.permute.xlu0 0
      %609 = vperm.xlu0 %608, %v495
      %v610 = vpop.permute.xlu0 %609
      %613 = vset.pattern.permute.xlu0 0
      %614 = vperm.xlu0 %613, %v496
      %v615 = vpop.permute.xlu0 %614
      %618 = vset.pattern.permute.xlu0 0
      %619 = vperm.xlu0 %618, %v497
      %v620 = vpop.permute.xlu0 %619
      %623 = vset.pattern.permute.xlu0 0
      %624 = vperm.xlu0 %623, %v498
      %v625 = vpop.permute.xlu0 %624
      %628 = vset.pattern.permute.xlu0 0
      %629 = vperm.xlu0 %628, %v499
      %v630 = vpop.permute.xlu0 %629
      %633 = vset.pattern.permute.xlu0 0
      %634 = vperm.xlu0 %633, %v500
      %v635 = vpop.permute.xlu0 %634
      %638 = vset.pattern.permute.xlu0 0
      %639 = vperm.xlu0 %638, %v501
      %v640 = vpop.permute.xlu0 %639
      %643 = vset.pattern.permute.xlu0 0
      %644 = vperm.xlu0 %643, %v502
      %v645 = vpop.permute.xlu0 %644
      %648 = vset.pattern.permute.xlu0 0
      %649 = vperm.xlu0 %648, %v503
      %v650 = vpop.permute.xlu0 %649
      %653 = vset.pattern.permute.xlu0 0
      %654 = vperm.xlu0 %653, %v504
      %v655 = vpop.permute.xlu0 %654
      %658 = vset.pattern.permute.xlu0 0
      %659 = vperm.xlu0 %658, %v505
      %v660 = vpop.permute.xlu0 %659
      %663 = vset.pattern.permute.xlu0 0
      %664 = vperm.xlu0 %663, %v506
      %v665 = vpop.permute.xlu0 %664
      %v667 = vadd.f32 %v443, %v510
      %v668 = vadd.f32 %v444, %v515
      %v669 = vadd.f32 %v445, %v520
      %v670 = vadd.f32 %v446, %v525
      %v671 = vadd.f32 %v447, %v530
      %v672 = vadd.f32 %v448, %v535
      %v673 = vadd.f32 %v449, %v540
      %v674 = vadd.f32 %v450, %v545
      %v675 = vadd.f32 %v451, %v550
      %v676 = vadd.f32 %v452, %v555
      %v677 = vadd.f32 %v453, %v560
      %v678 = vadd.f32 %v454, %v565
      %v679 = vadd.f32 %v455, %v570
      %v680 = vadd.f32 %v456, %v575
      %v681 = vadd.f32 %v457, %v580
      %v682 = vadd.f32 %v458, %v585
      %v683 = vadd.f32 %v459, %v590
      %v684 = vadd.f32 %v460, %v595
      %v685 = vadd.f32 %v461, %v600
      %v686 = vadd.f32 %v462, %v605
      %v687 = vadd.f32 %v463, %v610
      %v688 = vadd.f32 %v464, %v615
      %v689 = vadd.f32 %v465, %v620
      %v690 = vadd.f32 %v466, %v625
      %v691 = vadd.f32 %v467, %v630
      %v692 = vadd.f32 %v468, %v635
      %v693 = vadd.f32 %v469, %v640
      %v694 = vadd.f32 %v470, %v645
      %v695 = vadd.f32 %v471, %v650
      %v696 = vadd.f32 %v472, %v655
      %v697 = vadd.f32 %v473, %v660
      %v698 = vadd.f32 %v474, %v665
      %v699 = vmax.f32 %v667, 0.0
      %v700 = vmax.f32 %v668, 0.0
      %v701 = vmax.f32 %v669, 0.0
      %v702 = vmax.f32 %v670, 0.0
      %v703 = vmax.f32 %v671, 0.0
      %v704 = vmax.f32 %v672, 0.0
      %v705 = vmax.f32 %v673, 0.0
      %v706 = vmax.f32 %v674, 0.0
      %v707 = vmax.f32 %v675, 0.0
      %v708 = vmax.f32 %v676, 0.0
      %v709 = vmax.f32 %v677, 0.0
      %v710 = vmax.f32 %v678, 0.0
      %v711 = vmax.f32 %v679, 0.0
      %v712 = vmax.f32 %v680, 0.0
      %v713 = vmax.f32 %v681, 0.0
      %v714 = vmax.f32 %v682, 0.0
      %v715 = vmax.f32 %v683, 0.0
      %v716 = vmax.f32 %v684, 0.0
      %v717 = vmax.f32 %v685, 0.0
      %v718 = vmax.f32 %v686, 0.0
      %v719 = vmax.f32 %v687, 0.0
      %v720 = vmax.f32 %v688, 0.0
      %v721 = vmax.f32 %v689, 0.0
      %v722 = vmax.f32 %v690, 0.0
      %v723 = vmax.f32 %v691, 0.0
      %v724 = vmax.f32 %v692, 0.0
      %v725 = vmax.f32 %v693, 0.0
      %v726 = vmax.f32 %v694, 0.0
      %v727 = vmax.f32 %v695, 0.0
      %v728 = vmax.f32 %v696, 0.0
      %v729 = vmax.f32 %v697, 0.0
      %v730 = vmax.f32 %v698, 0.0
      %v731 = vld [vmem:[%s3] sm:$0x1f]
      %v732 = vld [vmem:[%s3 + $0x8] sm:$0x1f]
      %v733 = vld [vmem:[%s4] sm:$0x1f]
      %735 = vset.pattern.permute.xlu0 0
      %736 = vperm.xlu0 %735, %v733
      %v737 = vpop.permute.xlu0 %736
      %739 = vmatprep.subr.mxu0 0.0
      %740 = vmatpush1.msra.mxu0 %v699
      %741 = vmatprep.subr.mxu0 0.0
      %742 = vmatpush1.msra.mxu0 %v700
      %743 = vmatprep.subr.mxu0 0.0
      %744 = vmatpush1.msra.mxu0 %v701
      %745 = vmatprep.subr.mxu0 0.0
      %746 = vmatpush1.msra.mxu0 %v702
      %747 = vmatprep.subr.mxu0 0.0
      %748 = vmatpush1.msra.mxu0 %v703
      %749 = vmatprep.subr.mxu0 0.0
      %750 = vmatpush1.msra.mxu0 %v704
      %751 = vmatprep.subr.mxu0 0.0
      %752 = vmatpush1.msra.mxu0 %v705
      %753 = vmatprep.subr.mxu0 0.0
      %754 = vmatpush1.msra.mxu0 %v706
      %755 = vmatprep.subr.mxu0 0.0
      %756 = vmatpush1.msra.mxu0 %v707
      %757 = vmatprep.subr.mxu0 0.0
      %758 = vmatpush1.msra.mxu0 %v708
      %759 = vmatprep.subr.mxu0 0.0
      %760 = vmatpush1.msra.mxu0 %v709
      %761 = vmatprep.subr.mxu0 0.0
      %762 = vmatpush1.msra.mxu0 %v710
      %763 = vmatprep.subr.mxu0 0.0
      %764 = vmatpush1.msra.mxu0 %v711
      %765 = vmatprep.subr.mxu0 0.0
      %766 = vmatpush1.msra.mxu0 %v712
      %767 = vmatprep.subr.mxu0 0.0
      %768 = vmatpush1.msra.mxu0 %v713
      %769 = vmatprep.subr.mxu0 0.0
      %770 = vmatpush1.msra.mxu0 %v714
      %771 = vmatprep.subr.mxu0 0.0
      %772 = vmatpush1.msra.mxu0 %v715
      %773 = vmatprep.subr.mxu0 0.0
      %774 = vmatpush1.msra.mxu0 %v716
      %775 = vmatprep.subr.mxu0 0.0
      %776 = vmatpush1.msra.mxu0 %v717
      %777 = vmatprep.subr.mxu0 0.0
      %778 = vmatpush1.msra.mxu0 %v718
      %779 = vmatprep.subr.mxu0 0.0
      %780 = vmatpush1.msra.mxu0 %v719
      %781 = vmatprep.subr.mxu0 0.0
      %782 = vmatpush1.msra.mxu0 %v720
      %783 = vmatprep.subr.mxu0 0.0
      %784 = vmatpush1.msra.mxu0 %v721
      %785 = vmatprep.subr.mxu0 0.0
      %786 = vmatpush1.msra.mxu0 %v722
      %787 = vmatprep.subr.mxu0 0.0
      %788 = vmatpush1.msra.mxu0 %v723
      %789 = vmatprep.subr.mxu0 0.0
      %790 = vmatpush1.msra.mxu0 %v724
      %791 = vmatprep.subr.mxu0 0.0
      %792 = vmatpush1.msra.mxu0 %v725
      %793 = vmatprep.subr.mxu0 0.0
      %794 = vmatpush1.msra.mxu0 %v726
      %795 = vmatprep.subr.mxu0 0.0
      %796 = vmatpush1.msra.mxu0 %v727
      %797 = vmatprep.subr.mxu0 0.0
      %798 = vmatpush1.msra.mxu0 %v728
      %799 = vmatprep.subr.mxu0 0.0
      %800 = vmatpush1.msra.mxu0 %v729
      %801 = vmatprep.subr.mxu0 0.0
      %802 = vmatpush1.msra.mxu0 %v730
      %803 = vmatprep.mubr.f32.mxu0 %v732
      %804 = vmatmul.mubr.f32.gmra.mrb[0].mxu0 %v731
      %v805 = vpop.f32.mrb[0].mxu0
      %v806 = vadd.f32 %v737, %v805
      %v807 = vpop.f32.mrb[0].mxu0
      %808 = vdwg.mxu0
      %vm809 = vcmask 1044480
      %v810 = vsel %vm809, %v806, 0.0
      %v811 = vrot.slane %v810, 4
      %v812 = vadd.f32 %v810, %v811
      %v813 = vrot.slane %v812, 2
      %v814 = vadd.f32 %v812, %v813
      %v815 = vrot.slane %v814, 1
      %v816 = vadd.f32 %v814, %v815
      %v817 = vmul.f32 %v816, 0.2
      %v818 = vsub.f32 %v806, %v817
      %v819 = vmul.f32 %v818, %v818
      %v820 = vsel %vm809, %v819, 0.0
      %v821 = vrot.slane %v820, 4
      %v822 = vadd.f32 %v820, %v821
      %v823 = vrot.slane %v822, 2
      %v824 = vadd.f32 %v822, %v823
      %v825 = vrot.slane %v824, 1
      %v826 = vadd.f32 %v824, %v825
      %v827 = vmul.f32 %v826, 0.25
      %v828 = vmax.f32 %v827, 0.0
      %v829 = vrsqrt.pop %v828
      %v830 = vmul.f32 %v828, %v829
      %vm831 = vcmp.eq.f32.partialorder %v828, inf
      %v832 = vsel %vm831, %v828, %v830
      %vm833 = vcmp.eq.f32.partialorder %v828, 0.0
      %v834 = vand.u32 %v828, 2147483648
      %v835 = vsel %vm833, %v834, %v832
      %vm836 = vcmask 1040384
      %v837 = vsel %vm836, %v817, %v835
      %838 = vst [vmem:[#allocation6] sm:$0x3] %v837
    $region33: #{tpu_custom_call.1} parent=1 // pred_fallthru
      _
    // Predicated region
    $region34: #{tpu_custom_call.1} parent=1 // pred_check
      _
    $region35: #{tpu_custom_call.1} parent=1 // pred_check_branch
      %840 = sbr.rel (0) target = $region37
    $region36: #{tpu_custom_call.1} parent=1 // pred_region
      %s842 = ssub.s32 32, 32
      %843 = vsyncadd [#allocation5], %s842
      %s845 = sshll.u32 [#allocation6], 4
      %s846 = int_to_ptr.vmem [resolvable:$true] %s845
      %848 = dma.vmem_to_hbm [thread:$0]  %s846, 32, %s5, [#allocation5]
    $region37: #{tpu_custom_call.1} parent=1 // pred_fallthru
      _
    // Predicated region
    $region38: #{tpu_custom_call.1} parent=1 // pred_check
      _
    $region39: #{tpu_custom_call.1} parent=1 // pred_check_branch
      %850 = sbr.rel (0) target = $region41
    $region40: #{tpu_custom_call.1} parent=1 // pred_region
      %851 = dma.done [#allocation5], 32
    $region41: #{tpu_custom_call.1} parent=1 // pred_fallthru
      _
    %852 = vsyncpa [#allocation4], 1
    %853 = vsyncpa [#allocation5], 1

</llo_original>
